<compile_context>
chip_gen: v7x
topology: tpu7x:2x2x1
jax: 0.10.0
libtpu: 0.0.40
codegen_flags: <defaults>
</compile_context>

<pallas_src>
import jax
import jax.numpy as jnp
from jax.experimental import pallas as pl
from jax.experimental.pallas import tpu as pltpu

B = 2
H = W = 8
DIM = 16
OUT_DIM = 32          # not in {320, 448, 576} -> conv2 stride is 2
HO, WO = H // 2, W // 2
BN_EPS = 1e-5


def _gelu(x):
    # TODO(synk): PyTorch nn.GELU() default is exact (erf); tanh approximation
    # is used because erf has no Mosaic lowering (reference uses the same fn).
    c = 0.7978845608028654  # sqrt(2/pi)
    return 0.5 * x * (1.0 + jnp.tanh(c * (x + 0.044715 * x * x * x)))


def _patch_merging_kernel(x_ref, w1_ref, b1_ref, w2_ref, b2_ref, w3_ref,
                          b3_ref, out_ref, yp_ref):
    # ---- conv1 (1x1, DIM -> OUT_DIM) + folded BN + GELU: one fused matmul ----
    x2d = x_ref[...].reshape(B * H * W, DIM)                  # (128, 16)
    y1 = _gelu(jnp.dot(x2d, w1_ref[...],
                       preferred_element_type=jnp.float32) + b1_ref[...])
    # Zero the halo scratch once, then one contiguous interior store (pad=1).
    yp_ref[...] = jnp.zeros_like(yp_ref)
    yp_ref[:, 1:H + 1, 1:W + 1, :] = y1.reshape(B, H, W, OUT_DIM)

    # ---- conv2 (3x3 depthwise) + folded BN + GELU, evaluated dense ----------
    # Dense (stride-1) evaluation keeps every tap a contiguous (B, H, W, C)
    # load; the stride-2 subsample is applied once at the very end (conv3 is
    # 1x1, so it commutes with the subsample).
    w2 = w2_ref[...]                                          # (9, OUT_DIM), hoisted
    acc = jnp.zeros((B, H, W, OUT_DIM), jnp.float32)
    for ky in range(3):
        for kx in range(3):
            tap = yp_ref[:, ky:ky + H, kx:kx + W, :]          # (B, H, W, C)
            acc = acc + tap * w2[3 * ky + kx]
    z = _gelu(acc + b2_ref[...])                              # (B, H, W, C)

    # ---- conv3 (1x1, OUT_DIM -> OUT_DIM) + folded BN: one matmul ------------
    o = jnp.dot(z.reshape(B * H * W, OUT_DIM), w3_ref[...],
                preferred_element_type=jnp.float32) + b3_ref[...]

    # ---- stride-2 spatial subsample (conv2 stride folded out) ---------------
    # Reuse the halo scratch (its conv1 contents are fully consumed) to stage
    # the dense result; a single strided read then feeds the output store.
    yp_ref[:, 1:H + 1, 1:W + 1, :] = o.reshape(B, H, W, OUT_DIM)
    out_ref[...] = yp_ref[:, pl.ds(1, HO, 2), pl.ds(1, WO, 2), :]


@jax.jit
def patch_merging(x, w1e, b1e, w2e, b2e, w3e, b3e):
    grid_spec = pltpu.PrefetchScalarGridSpec(
        num_scalar_prefetch=0,
        grid=(1,),
        in_specs=[
            pl.BlockSpec((B, H * W, DIM), lambda i: (0, 0, 0)),
            pl.BlockSpec((DIM, OUT_DIM), lambda i: (0, 0)),
            pl.BlockSpec((1, OUT_DIM), lambda i: (0, 0)),
            pl.BlockSpec((9, OUT_DIM), lambda i: (0, 0)),
            pl.BlockSpec((1, OUT_DIM), lambda i: (0, 0)),
            pl.BlockSpec((OUT_DIM, OUT_DIM), lambda i: (0, 0)),
            pl.BlockSpec((1, OUT_DIM), lambda i: (0, 0)),
        ],
        out_specs=pl.BlockSpec((B, HO, WO, OUT_DIM), lambda i: (0, 0, 0, 0)),
        scratch_shapes=[
            pltpu.VMEM((B, H + 2, W + 2, OUT_DIM), jnp.float32),  # padded halo
        ],
    )
    out4 = pl.pallas_call(
        _patch_merging_kernel,
        out_shape=jax.ShapeDtypeStruct((B, HO, WO, OUT_DIM), jnp.float32),
        grid_spec=grid_spec,
        compiler_params=pltpu.CompilerParams(dimension_semantics=("arbitrary",)),
    )(x, w1e, b1e, w2e, b2e, w3e, b3e)
    # Free (bitcast) reshape: (B, HO, WO, C) -> (B, HO*WO, C).
    return out4.reshape(B, HO * WO, OUT_DIM)


def make_params(key):
    """Deterministic parameters; BatchNorm (eval mode) folded into each conv."""
    k1, k2, k3 = jax.random.split(key, 3)
    w1 = jax.random.normal(k1, (OUT_DIM, DIM), jnp.float32) * 0.05   # 1x1
    w2 = jax.random.normal(k2, (OUT_DIM, 3, 3), jnp.float32) * 0.2   # depthwise 3x3
    w3 = jax.random.normal(k3, (OUT_DIM, OUT_DIM), jnp.float32) * 0.05
    # Conv2d_BN.__init__: bn.weight = 1, bn.bias = 0; eval buffers mean=0, var=1
    gamma = jnp.ones((OUT_DIM,), jnp.float32)
    beta = jnp.zeros((OUT_DIM,), jnp.float32)
    mean = jnp.zeros((OUT_DIM,), jnp.float32)
    var = jnp.ones((OUT_DIM,), jnp.float32)
    scale = gamma / jnp.sqrt(var + BN_EPS)
    bias = beta - mean * scale

    w1e = (w1 * scale[:, None]).T                              # (DIM, OUT_DIM)
    b1e = bias.reshape(1, OUT_DIM)
    w2e = jnp.transpose(w2 * scale[:, None, None], (1, 2, 0)).reshape(9, OUT_DIM)
    b2e = bias.reshape(1, OUT_DIM)
    w3e = (w3 * scale[:, None]).T                              # (OUT_DIM, OUT_DIM)
    b3e = bias.reshape(1, OUT_DIM)
    return w1e, b1e, w2e, b2e, w3e, b3e


def reference(x, w1e, b1e, w2e, b2e, w3e, b3e):
    """Plain-JAX reference (independent code path) for validation."""
    xh = x.reshape(B, H, W, DIM)
    y1 = _gelu(jnp.einsum('bhwd,dc->bhwc', xh, w1e) + b1e.reshape(1, 1, 1, -1))
    y1p = jnp.pad(y1, ((0, 0), (1, 1), (1, 1), (0, 0)))
    w2_33 = w2e.reshape(3, 3, OUT_DIM)
    z = jnp.zeros((B, HO, WO, OUT_DIM), jnp.float32)
    for ky in range(3):
        for kx in range(3):
            z = z + y1p[:, ky:ky + 2 * HO:2, kx:kx + 2 * WO:2, :] * w2_33[ky, kx]
    z = _gelu(z + b2e.reshape(1, 1, 1, -1))
    out = jnp.einsum('bhwc,ce->bhwe', z, w3e) + b3e.reshape(1, 1, 1, -1)
    return out.reshape(B, HO * WO, OUT_DIM)


if __name__ == "__main__":
    key = jax.random.PRNGKey(0)
    kx, kp = jax.random.split(key)
    x = jax.random.normal(kx, (B, H * W, DIM), jnp.float32)   # (B, L, dim)
    params = make_params(kp)

    out = patch_merging(x, *params)
    jax.block_until_ready(out)

    ref = reference(x, *params)
    assert out.shape == (B, HO * WO, OUT_DIM)
    if not jnp.allclose(out, ref, atol=2e-3, rtol=2e-2):
        raise AssertionError(
            f"mismatch vs reference, max abs err = {jnp.max(jnp.abs(out - ref))}")
    print("KERNEL_OK")
</pallas_src>

<mosaic_0001>
module attributes {stable_mosaic.version = 11 : i64} {
  func.func @_patch_merging_kernel(%arg0: i32, %arg1: memref<2x64x16xf32, #tpu.memory_space<vmem>>, %arg2: memref<16x32xf32, #tpu.memory_space<vmem>>, %arg3: memref<1x32xf32, #tpu.memory_space<vmem>>, %arg4: memref<9x32xf32, #tpu.memory_space<vmem>>, %arg5: memref<1x32xf32, #tpu.memory_space<vmem>>, %arg6: memref<32x32xf32, #tpu.memory_space<vmem>>, %arg7: memref<1x32xf32, #tpu.memory_space<vmem>>, %arg8: memref<2x4x4x32xf32, #tpu.memory_space<vmem>>, %arg9: memref<2x10x10x32xf32, #tpu.memory_space<vmem>>) attributes {dimension_semantics = [#tpu.dimension_semantics<arbitrary>], iteration_bounds = array<i64: 1>, scalar_prefetch = 0 : i64, scratch_operands = 1 : i64, tpu.core_type = #tpu.core_type<tc>, window_params = [{pipeline_mode = #tpu.pipeline_mode<synchronous>, transform_indices = @transform_0, window_bounds = array<i64: 2, 64, 16>}, {pipeline_mode = #tpu.pipeline_mode<synchronous>, transform_indices = @transform_1, window_bounds = array<i64: 16, 32>}, {pipeline_mode = #tpu.pipeline_mode<synchronous>, transform_indices = @transform_2, window_bounds = array<i64: 1, 32>}, {pipeline_mode = #tpu.pipeline_mode<synchronous>, transform_indices = @transform_3, window_bounds = array<i64: 9, 32>}, {pipeline_mode = #tpu.pipeline_mode<synchronous>, transform_indices = @transform_4, window_bounds = array<i64: 1, 32>}, {pipeline_mode = #tpu.pipeline_mode<synchronous>, transform_indices = @transform_5, window_bounds = array<i64: 32, 32>}, {pipeline_mode = #tpu.pipeline_mode<synchronous>, transform_indices = @transform_6, window_bounds = array<i64: 1, 32>}, {pipeline_mode = #tpu.pipeline_mode<synchronous>, transform_indices = @transform_7, window_bounds = array<i64: 2, 4, 4, 32>}]} {
    %c0 = arith.constant 0 : index
    %c0_0 = arith.constant 0 : index
    %c0_1 = arith.constant 0 : index
    %0 = vector.load %arg1[%c0, %c0_0, %c0_1] : memref<2x64x16xf32, #tpu.memory_space<vmem>>, vector<2x64x16xf32>
    %1 = vector.shape_cast %0 : vector<2x64x16xf32> to vector<128x16xf32>
    %c0_2 = arith.constant 0 : index
    %c0_3 = arith.constant 0 : index
    %2 = vector.load %arg2[%c0_2, %c0_3] : memref<16x32xf32, #tpu.memory_space<vmem>>, vector<16x32xf32>
    %cst = arith.constant dense<0.000000e+00> : vector<128x32xf32>
    %3 = tpu.matmul %1, %2, %cst {dimension_numbers = #tpu.dot_dimension_numbers<[1], [0], [0], [1], [0, 0, 1, 1], [], []>} : vector<128x16xf32>, vector<16x32xf32>, vector<128x32xf32> -> vector<128x32xf32>
    %c0_4 = arith.constant 0 : index
    %c0_5 = arith.constant 0 : index
    %4 = vector.load %arg3[%c0_4, %c0_5] : memref<1x32xf32, #tpu.memory_space<vmem>>, vector<1x32xf32>
    %5 = vector.broadcast %4 : vector<1x32xf32> to vector<128x32xf32>
    %6 = arith.addf %3, %5 : vector<128x32xf32>
    %cst_6 = arith.constant 5.000000e-01 : f32
    %7 = vector.broadcast %cst_6 : f32 to vector<128x32xf32>
    %8 = arith.mulf %7, %6 : vector<128x32xf32>
    %cst_7 = arith.constant 4.471500e-02 : f32
    %9 = vector.broadcast %cst_7 : f32 to vector<128x32xf32>
    %10 = arith.mulf %9, %6 : vector<128x32xf32>
    %11 = arith.mulf %10, %6 : vector<128x32xf32>
    %12 = arith.mulf %11, %6 : vector<128x32xf32>
    %13 = arith.addf %6, %12 : vector<128x32xf32>
    %cst_8 = arith.constant 0.797884583 : f32
    %14 = vector.broadcast %cst_8 : f32 to vector<128x32xf32>
    %15 = arith.mulf %14, %13 : vector<128x32xf32>
    %16 = math.tanh %15 : vector<128x32xf32>
    %cst_9 = arith.constant 1.000000e+00 : f32
    %17 = vector.broadcast %cst_9 : f32 to vector<128x32xf32>
    %18 = arith.addf %17, %16 : vector<128x32xf32>
    %19 = arith.mulf %8, %18 : vector<128x32xf32>
    %cst_10 = arith.constant 0.000000e+00 : f32
    %20 = vector.broadcast %cst_10 : f32 to vector<2x10x10x32xf32>
    %c0_11 = arith.constant 0 : index
    %c0_12 = arith.constant 0 : index
    %c0_13 = arith.constant 0 : index
    %c0_14 = arith.constant 0 : index
    %21 = vector.load %arg9[%c0_11, %c0_12, %c0_13, %c0_14] : memref<2x10x10x32xf32, #tpu.memory_space<vmem>>, vector<2x10x10x32xf32>
    tpu.vector_store %arg9[%c0_11, %c0_12, %c0_13, %c0_14], %20 {strides = array<i32>} : memref<2x10x10x32xf32, #tpu.memory_space<vmem>>, vector<2x10x10x32xf32>,
    %22 = vector.shape_cast %19 : vector<128x32xf32> to vector<2x8x8x32xf32>
    %c0_15 = arith.constant 0 : index
    %c1 = arith.constant 1 : index
    %c1_16 = arith.constant 1 : index
    %c0_17 = arith.constant 0 : index
    %23 = vector.load %arg9[%c0_15, %c1, %c1_16, %c0_17] : memref<2x10x10x32xf32, #tpu.memory_space<vmem>>, vector<2x8x8x32xf32>
    tpu.vector_store %arg9[%c0_15, %c1, %c1_16, %c0_17], %22 {strides = array<i32>} : memref<2x10x10x32xf32, #tpu.memory_space<vmem>>, vector<2x8x8x32xf32>,
    %c0_18 = arith.constant 0 : index
    %c0_19 = arith.constant 0 : index
    %24 = vector.load %arg4[%c0_18, %c0_19] : memref<9x32xf32, #tpu.memory_space<vmem>>, vector<9x32xf32>
    %cst_20 = arith.constant 0.000000e+00 : f32
    %25 = vector.broadcast %cst_20 : f32 to vector<2x8x8x32xf32>
    %c0_21 = arith.constant 0 : index
    %c0_22 = arith.constant 0 : index
    %c0_23 = arith.constant 0 : index
    %c0_24 = arith.constant 0 : index
    %26 = vector.load %arg9[%c0_21, %c0_22, %c0_23, %c0_24] : memref<2x10x10x32xf32, #tpu.memory_space<vmem>>, vector<2x8x8x32xf32>
    %27 = vector.extract_strided_slice %24 {offsets = [0, 0], sizes = [1, 32], strides = [1, 1]} : vector<9x32xf32> to vector<1x32xf32>
    %28 = vector.shape_cast %27 : vector<1x32xf32> to vector<32xf32>
    %29 = vector.shape_cast %28 : vector<32xf32> to vector<1x1x1x32xf32>
    %30 = vector.broadcast %29 : vector<1x1x1x32xf32> to vector<2x8x8x32xf32>
    %31 = arith.mulf %26, %30 : vector<2x8x8x32xf32>
    %32 = arith.addf %25, %31 : vector<2x8x8x32xf32>
    %c0_25 = arith.constant 0 : index
    %c0_26 = arith.constant 0 : index
    %c1_27 = arith.constant 1 : index
    %c0_28 = arith.constant 0 : index
    %33 = vector.load %arg9[%c0_25, %c0_26, %c1_27, %c0_28] : memref<2x10x10x32xf32, #tpu.memory_space<vmem>>, vector<2x8x8x32xf32>
    %34 = vector.extract_strided_slice %24 {offsets = [1, 0], sizes = [1, 32], strides = [1, 1]} : vector<9x32xf32> to vector<1x32xf32>
    %35 = vector.shape_cast %34 : vector<1x32xf32> to vector<32xf32>
    %36 = vector.shape_cast %35 : vector<32xf32> to vector<1x1x1x32xf32>
    %37 = vector.broadcast %36 : vector<1x1x1x32xf32> to vector<2x8x8x32xf32>
    %38 = arith.mulf %33, %37 : vector<2x8x8x32xf32>
    %39 = arith.addf %32, %38 : vector<2x8x8x32xf32>
    %c0_29 = arith.constant 0 : index
    %c0_30 = arith.constant 0 : index
    %c2 = arith.constant 2 : index
    %c0_31 = arith.constant 0 : index
    %40 = vector.load %arg9[%c0_29, %c0_30, %c2, %c0_31] : memref<2x10x10x32xf32, #tpu.memory_space<vmem>>, vector<2x8x8x32xf32>
    %41 = vector.extract_strided_slice %24 {offsets = [2, 0], sizes = [1, 32], strides = [1, 1]} : vector<9x32xf32> to vector<1x32xf32>
    %42 = vector.shape_cast %41 : vector<1x32xf32> to vector<32xf32>
    %43 = vector.shape_cast %42 : vector<32xf32> to vector<1x1x1x32xf32>
    %44 = vector.broadcast %43 : vector<1x1x1x32xf32> to vector<2x8x8x32xf32>
    %45 = arith.mulf %40, %44 : vector<2x8x8x32xf32>
    %46 = arith.addf %39, %45 : vector<2x8x8x32xf32>
    %c0_32 = arith.constant 0 : index
    %c1_33 = arith.constant 1 : index
    %c0_34 = arith.constant 0 : index
    %c0_35 = arith.constant 0 : index
    %47 = vector.load %arg9[%c0_32, %c1_33, %c0_34, %c0_35] : memref<2x10x10x32xf32, #tpu.memory_space<vmem>>, vector<2x8x8x32xf32>
    %48 = vector.extract_strided_slice %24 {offsets = [3, 0], sizes = [1, 32], strides = [1, 1]} : vector<9x32xf32> to vector<1x32xf32>
    %49 = vector.shape_cast %48 : vector<1x32xf32> to vector<32xf32>
    %50 = vector.shape_cast %49 : vector<32xf32> to vector<1x1x1x32xf32>
    %51 = vector.broadcast %50 : vector<1x1x1x32xf32> to vector<2x8x8x32xf32>
    %52 = arith.mulf %47, %51 : vector<2x8x8x32xf32>
    %53 = arith.addf %46, %52 : vector<2x8x8x32xf32>
    %c0_36 = arith.constant 0 : index
    %c1_37 = arith.constant 1 : index
    %c1_38 = arith.constant 1 : index
    %c0_39 = arith.constant 0 : index
    %54 = vector.load %arg9[%c0_36, %c1_37, %c1_38, %c0_39] : memref<2x10x10x32xf32, #tpu.memory_space<vmem>>, vector<2x8x8x32xf32>
    %55 = vector.extract_strided_slice %24 {offsets = [4, 0], sizes = [1, 32], strides = [1, 1]} : vector<9x32xf32> to vector<1x32xf32>
    %56 = vector.shape_cast %55 : vector<1x32xf32> to vector<32xf32>
    %57 = vector.shape_cast %56 : vector<32xf32> to vector<1x1x1x32xf32>
    %58 = vector.broadcast %57 : vector<1x1x1x32xf32> to vector<2x8x8x32xf32>
    %59 = arith.mulf %54, %58 : vector<2x8x8x32xf32>
    %60 = arith.addf %53, %59 : vector<2x8x8x32xf32>
    %c0_40 = arith.constant 0 : index
    %c1_41 = arith.constant 1 : index
    %c2_42 = arith.constant 2 : index
    %c0_43 = arith.constant 0 : index
    %61 = vector.load %arg9[%c0_40, %c1_41, %c2_42, %c0_43] : memref<2x10x10x32xf32, #tpu.memory_space<vmem>>, vector<2x8x8x32xf32>
    %62 = vector.extract_strided_slice %24 {offsets = [5, 0], sizes = [1, 32], strides = [1, 1]} : vector<9x32xf32> to vector<1x32xf32>
    %63 = vector.shape_cast %62 : vector<1x32xf32> to vector<32xf32>
    %64 = vector.shape_cast %63 : vector<32xf32> to vector<1x1x1x32xf32>
    %65 = vector.broadcast %64 : vector<1x1x1x32xf32> to vector<2x8x8x32xf32>
    %66 = arith.mulf %61, %65 : vector<2x8x8x32xf32>
    %67 = arith.addf %60, %66 : vector<2x8x8x32xf32>
    %c0_44 = arith.constant 0 : index
    %c2_45 = arith.constant 2 : index
    %c0_46 = arith.constant 0 : index
    %c0_47 = arith.constant 0 : index
    %68 = vector.load %arg9[%c0_44, %c2_45, %c0_46, %c0_47] : memref<2x10x10x32xf32, #tpu.memory_space<vmem>>, vector<2x8x8x32xf32>
    %69 = vector.extract_strided_slice %24 {offsets = [6, 0], sizes = [1, 32], strides = [1, 1]} : vector<9x32xf32> to vector<1x32xf32>
    %70 = vector.shape_cast %69 : vector<1x32xf32> to vector<32xf32>
    %71 = vector.shape_cast %70 : vector<32xf32> to vector<1x1x1x32xf32>
    %72 = vector.broadcast %71 : vector<1x1x1x32xf32> to vector<2x8x8x32xf32>
    %73 = arith.mulf %68, %72 : vector<2x8x8x32xf32>
    %74 = arith.addf %67, %73 : vector<2x8x8x32xf32>
    %c0_48 = arith.constant 0 : index
    %c2_49 = arith.constant 2 : index
    %c1_50 = arith.constant 1 : index
    %c0_51 = arith.constant 0 : index
    %75 = vector.load %arg9[%c0_48, %c2_49, %c1_50, %c0_51] : memref<2x10x10x32xf32, #tpu.memory_space<vmem>>, vector<2x8x8x32xf32>
    %76 = vector.extract_strided_slice %24 {offsets = [7, 0], sizes = [1, 32], strides = [1, 1]} : vector<9x32xf32> to vector<1x32xf32>
    %77 = vector.shape_cast %76 : vector<1x32xf32> to vector<32xf32>
    %78 = vector.shape_cast %77 : vector<32xf32> to vector<1x1x1x32xf32>
    %79 = vector.broadcast %78 : vector<1x1x1x32xf32> to vector<2x8x8x32xf32>
    %80 = arith.mulf %75, %79 : vector<2x8x8x32xf32>
    %81 = arith.addf %74, %80 : vector<2x8x8x32xf32>
    %c0_52 = arith.constant 0 : index
    %c2_53 = arith.constant 2 : index
    %c2_54 = arith.constant 2 : index
    %c0_55 = arith.constant 0 : index
    %82 = vector.load %arg9[%c0_52, %c2_53, %c2_54, %c0_55] : memref<2x10x10x32xf32, #tpu.memory_space<vmem>>, vector<2x8x8x32xf32>
    %83 = vector.extract_strided_slice %24 {offsets = [8, 0], sizes = [1, 32], strides = [1, 1]} : vector<9x32xf32> to vector<1x32xf32>
    %84 = vector.shape_cast %83 : vector<1x32xf32> to vector<32xf32>
    %85 = vector.shape_cast %84 : vector<32xf32> to vector<1x1x1x32xf32>
    %86 = vector.broadcast %85 : vector<1x1x1x32xf32> to vector<2x8x8x32xf32>
    %87 = arith.mulf %82, %86 : vector<2x8x8x32xf32>
    %88 = arith.addf %81, %87 : vector<2x8x8x32xf32>
    %c0_56 = arith.constant 0 : index
    %c0_57 = arith.constant 0 : index
    %89 = vector.load %arg5[%c0_56, %c0_57] : memref<1x32xf32, #tpu.memory_space<vmem>>, vector<1x32xf32>
    %90 = vector.shape_cast %89 : vector<1x32xf32> to vector<1x1x1x32xf32>
    %91 = vector.broadcast %90 : vector<1x1x1x32xf32> to vector<2x8x8x32xf32>
    %92 = arith.addf %88, %91 : vector<2x8x8x32xf32>
    %cst_58 = arith.constant 5.000000e-01 : f32
    %93 = vector.broadcast %cst_58 : f32 to vector<2x8x8x32xf32>
    %94 = arith.mulf %93, %92 : vector<2x8x8x32xf32>
    %cst_59 = arith.constant 4.471500e-02 : f32
    %95 = vector.broadcast %cst_59 : f32 to vector<2x8x8x32xf32>
    %96 = arith.mulf %95, %92 : vector<2x8x8x32xf32>
    %97 = arith.mulf %96, %92 : vector<2x8x8x32xf32>
    %98 = arith.mulf %97, %92 : vector<2x8x8x32xf32>
    %99 = arith.addf %92, %98 : vector<2x8x8x32xf32>
    %cst_60 = arith.constant 0.797884583 : f32
    %100 = vector.broadcast %cst_60 : f32 to vector<2x8x8x32xf32>
    %101 = arith.mulf %100, %99 : vector<2x8x8x32xf32>
    %102 = math.tanh %101 : vector<2x8x8x32xf32>
    %cst_61 = arith.constant 1.000000e+00 : f32
    %103 = vector.broadcast %cst_61 : f32 to vector<2x8x8x32xf32>
    %104 = arith.addf %103, %102 : vector<2x8x8x32xf32>
    %105 = arith.mulf %94, %104 : vector<2x8x8x32xf32>
    %106 = vector.shape_cast %105 : vector<2x8x8x32xf32> to vector<128x32xf32>
    %c0_62 = arith.constant 0 : index
    %c0_63 = arith.constant 0 : index
    %107 = vector.load %arg6[%c0_62, %c0_63] : memref<32x32xf32, #tpu.memory_space<vmem>>, vector<32x32xf32>
    %cst_64 = arith.constant dense<0.000000e+00> : vector<128x32xf32>
    %108 = tpu.matmul %106, %107, %cst_64 {dimension_numbers = #tpu.dot_dimension_numbers<[1], [0], [0], [1], [0, 0, 1, 1], [], []>} : vector<128x32xf32>, vector<32x32xf32>, vector<128x32xf32> -> vector<128x32xf32>
    %c0_65 = arith.constant 0 : index
    %c0_66 = arith.constant 0 : index
    %109 = vector.load %arg7[%c0_65, %c0_66] : memref<1x32xf32, #tpu.memory_space<vmem>>, vector<1x32xf32>
    %110 = vector.broadcast %109 : vector<1x32xf32> to vector<128x32xf32>
    %111 = arith.addf %108, %110 : vector<128x32xf32>
    %112 = vector.shape_cast %111 : vector<128x32xf32> to vector<2x8x8x32xf32>
    %c0_67 = arith.constant 0 : index
    %c1_68 = arith.constant 1 : index
    %c1_69 = arith.constant 1 : index
    %c0_70 = arith.constant 0 : index
    %113 = vector.load %arg9[%c0_67, %c1_68, %c1_69, %c0_70] : memref<2x10x10x32xf32, #tpu.memory_space<vmem>>, vector<2x8x8x32xf32>
    tpu.vector_store %arg9[%c0_67, %c1_68, %c1_69, %c0_70], %112 {strides = array<i32>} : memref<2x10x10x32xf32, #tpu.memory_space<vmem>>, vector<2x8x8x32xf32>,
    %c0_71 = arith.constant 0 : index
    %c1_72 = arith.constant 1 : index
    %c1_73 = arith.constant 1 : index
    %c0_74 = arith.constant 0 : index
    %114 = tpu.strided_load %arg9[%c0_71, %c1_72, %c1_73, %c0_74] {strides = array<i32: 1, 2, 2, 1>} : memref<2x10x10x32xf32, #tpu.memory_space<vmem>>, vector<2x4x4x32xf32>
    %c0_75 = arith.constant 0 : index
    %c0_76 = arith.constant 0 : index
    %c0_77 = arith.constant 0 : index
    %c0_78 = arith.constant 0 : index
    %115 = vector.load %arg8[%c0_75, %c0_76, %c0_77, %c0_78] : memref<2x4x4x32xf32, #tpu.memory_space<vmem>>, vector<2x4x4x32xf32>
    tpu.vector_store %arg8[%c0_75, %c0_76, %c0_77, %c0_78], %114 {strides = array<i32>} : memref<2x4x4x32xf32, #tpu.memory_space<vmem>>, vector<2x4x4x32xf32>,
    return
  }
  func.func @transform_0(%arg0: i32) -> (i32, i32, i32) {
    %c0_i32 = arith.constant 0 : i32
    %c0_i32_0 = arith.constant 0 : i32
    %c0_i32_1 = arith.constant 0 : i32
    %c0_i32_2 = arith.constant 0 : i32
    return %c0_i32, %c0_i32_0, %c0_i32_1 : i32, i32, i32
  }
  func.func @transform_1(%arg0: i32) -> (i32, i32) {
    %c0_i32 = arith.constant 0 : i32
    %c0_i32_0 = arith.constant 0 : i32
    %c0_i32_1 = arith.constant 0 : i32
    return %c0_i32, %c0_i32_0 : i32, i32
  }
  func.func @transform_2(%arg0: i32) -> (i32, i32) {
    %c0_i32 = arith.constant 0 : i32
    %c0_i32_0 = arith.constant 0 : i32
    %c0_i32_1 = arith.constant 0 : i32
    return %c0_i32, %c0_i32_0 : i32, i32
  }
  func.func @transform_3(%arg0: i32) -> (i32, i32) {
    %c0_i32 = arith.constant 0 : i32
    %c0_i32_0 = arith.constant 0 : i32
    %c0_i32_1 = arith.constant 0 : i32
    return %c0_i32, %c0_i32_0 : i32, i32
  }
  func.func @transform_4(%arg0: i32) -> (i32, i32) {
    %c0_i32 = arith.constant 0 : i32
    %c0_i32_0 = arith.constant 0 : i32
    %c0_i32_1 = arith.constant 0 : i32
    return %c0_i32, %c0_i32_0 : i32, i32
  }
  func.func @transform_5(%arg0: i32) -> (i32, i32) {
    %c0_i32 = arith.constant 0 : i32
    %c0_i32_0 = arith.constant 0 : i32
    %c0_i32_1 = arith.constant 0 : i32
    return %c0_i32, %c0_i32_0 : i32, i32
  }
  func.func @transform_6(%arg0: i32) -> (i32, i32) {
    %c0_i32 = arith.constant 0 : i32
    %c0_i32_0 = arith.constant 0 : i32
    %c0_i32_1 = arith.constant 0 : i32
    return %c0_i32, %c0_i32_0 : i32, i32
  }
  func.func @transform_7(%arg0: i32) -> (i32, i32, i32, i32) {
    %c0_i32 = arith.constant 0 : i32
    %c0_i32_0 = arith.constant 0 : i32
    %c0_i32_1 = arith.constant 0 : i32
    %c0_i32_2 = arith.constant 0 : i32
    %c0_i32_3 = arith.constant 0 : i32
    return %c0_i32, %c0_i32_0, %c0_i32_1, %c0_i32_2 : i32, i32, i32, i32
  }
}

</mosaic_0001>

<llo_original>
// kernel: patch_merging.1
$region0: #{patch_merging.1}
  #allocation0 [shape = 'u32[]', space=smem, size = 0x4, offset = 0x4, fixed_abs, tag = 'smem constant byte address 0x4 - core index']
  #allocation1 [shape = 'u32[144,128]{1,0:T(1,128)}', space=vmem, size = 0x12000, scoped, tag = 'internal scratch']
  #allocation2 [shape = 'f32[2,10,10,32]{3,2,1,0:T(8,128)}', space=vmem, size = 0x28000, scoped, tag = 'scratch operand']
  %s0 = inlined_call_operand.vmem [shape: f32[2,64,16], index: 0, kind: input, shape index: {}]
  %s1 = inlined_call_operand.vmem [shape: f32[16,32], index: 1, kind: input, shape index: {}]
  %s2 = inlined_call_operand.vmem [shape: f32[1,32], index: 2, kind: input, shape index: {}]
  %s3 = inlined_call_operand.vmem [shape: f32[9,32], index: 3, kind: input, shape index: {}]
  %s4 = inlined_call_operand.vmem [shape: f32[1,32], index: 4, kind: input, shape index: {}]
  %s5 = inlined_call_operand.vmem [shape: f32[32,32], index: 5, kind: input, shape index: {}]
  %s6 = inlined_call_operand.vmem [shape: f32[1,32], index: 6, kind: input, shape index: {}]
  %s7 = inlined_call_operand.hbm [shape: f32[2,4,4,32], index: 7, kind: output, shape index: {}]
  %s8 = sld [smem:[#allocation0]]
  $region38: #{patch_merging.1} parent=0
    _
  %s10 = ssub.s32 1, %s8
  %s11 = scalar_select 0, %s10, %s8
  $region1: #{patch_merging.1} parent=0
    #allocation3 [shape = 'u8[16384]{0}', space=vmem, size = 0x4000, scoped, tag = 'output window, operand 0, single buffered']
    #allocation4 [shape = 's32[1]{0}', space=sflag, size = 0x4, scoped, tag = 'scoped memory for patch_merging.1']
    %12 = vsyncpa [#allocation4], 0
    // Predicated region
    $region2: #{patch_merging.1} parent=1 // pred_check
      _
    $region3: #{patch_merging.1} parent=1 // pred_check_branch
      %14 = sbr.rel (0) target = $region5
    $region4: #{patch_merging.1} parent=1 // pred_region
      _
    $region5: #{patch_merging.1} parent=1 // pred_fallthru
      _
    // Predicated region
    $region6: #{patch_merging.1} parent=1 // pred_check
      _
    $region7: #{patch_merging.1} parent=1 // pred_check_branch
      %16 = sbr.rel (0) target = $region9
    $region8: #{patch_merging.1} parent=1 // pred_region
      _
    $region9: #{patch_merging.1} parent=1 // pred_fallthru
      _
    // Predicated region
    $region10: #{patch_merging.1} parent=1 // pred_check
      _
    $region11: #{patch_merging.1} parent=1 // pred_check_branch
      %18 = sbr.rel (0) target = $region13
    $region12: #{patch_merging.1} parent=1 // pred_region
      _
    $region13: #{patch_merging.1} parent=1 // pred_fallthru
      _
    // Predicated region
    $region14: #{patch_merging.1} parent=1 // pred_check
      _
    $region15: #{patch_merging.1} parent=1 // pred_check_branch
      %20 = sbr.rel (0) target = $region17
    $region16: #{patch_merging.1} parent=1 // pred_region
      _
    $region17: #{patch_merging.1} parent=1 // pred_fallthru
      _
    // Predicated region
    $region18: #{patch_merging.1} parent=1 // pred_check
      _
    $region19: #{patch_merging.1} parent=1 // pred_check_branch
      %22 = sbr.rel (0) target = $region21
    $region20: #{patch_merging.1} parent=1 // pred_region
      _
    $region21: #{patch_merging.1} parent=1 // pred_fallthru
      _
    // Predicated region
    $region22: #{patch_merging.1} parent=1 // pred_check
      _
    $region23: #{patch_merging.1} parent=1 // pred_check_branch
      %24 = sbr.rel (0) target = $region25
    $region24: #{patch_merging.1} parent=1 // pred_region
      _
    $region25: #{patch_merging.1} parent=1 // pred_fallthru
      _
    // Predicated region
    $region26: #{patch_merging.1} parent=1 // pred_check
      _
    $region27: #{patch_merging.1} parent=1 // pred_check_branch
      %26 = sbr.rel (0) target = $region29
    $region28: #{patch_merging.1} parent=1 // pred_region
      _
    $region29: #{patch_merging.1} parent=1 // pred_fallthru
      _
    %v27 = vld [vmem:[%s0] sm:$0xff]
    %v28 = vld [vmem:[%s0 + $0x8] sm:$0xff]
    %v29 = vld [vmem:[%s0 + $0x10] sm:$0xff]
    %v30 = vld [vmem:[%s0 + $0x18] sm:$0xff]
    %v31 = vld [vmem:[%s0 + $0x20] sm:$0xff]
    %v32 = vld [vmem:[%s0 + $0x28] sm:$0xff]
    %v33 = vld [vmem:[%s0 + $0x30] sm:$0xff]
    %v34 = vld [vmem:[%s0 + $0x38] sm:$0xff]
    %v35 = vld [vmem:[%s0 + $0x40] sm:$0xff]
    %v36 = vld [vmem:[%s0 + $0x48] sm:$0xff]
    %v37 = vld [vmem:[%s0 + $0x50] sm:$0xff]
    %v38 = vld [vmem:[%s0 + $0x58] sm:$0xff]
    %v39 = vld [vmem:[%s0 + $0x60] sm:$0xff]
    %v40 = vld [vmem:[%s0 + $0x68] sm:$0xff]
    %v41 = vld [vmem:[%s0 + $0x70] sm:$0xff]
    %v42 = vld [vmem:[%s0 + $0x78] sm:$0xff]
    %v43 = vld [vmem:[%s1] sm:$0xff]
    %v44 = vld [vmem:[%s1 + $0x8] sm:$0xff]
    %v45 = vld [vmem:[%s2] sm:$0x1]
    %v47 = vlaneseq
    %v48 = vshrl.u32 %v47, 7
    %v49 = vsub.s32 0, %v48
    %v50 = vrot.slane %v45, %v49
    %vm52 = vcmask 130048
    %v54 = vsel %vm52, %v27, 0
    %v57 = vsel %vm52, %v28, 0
    %v60 = vsel %vm52, %v29, 0
    %v63 = vsel %vm52, %v30, 0
    %v66 = vsel %vm52, %v31, 0
    %v69 = vsel %vm52, %v32, 0
    %v72 = vsel %vm52, %v33, 0
    %v75 = vsel %vm52, %v34, 0
    %v78 = vsel %vm52, %v35, 0
    %v81 = vsel %vm52, %v36, 0
    %v84 = vsel %vm52, %v37, 0
    %v87 = vsel %vm52, %v38, 0
    %v90 = vsel %vm52, %v39, 0
    %v93 = vsel %vm52, %v40, 0
    %v96 = vsel %vm52, %v41, 0
    %v99 = vsel %vm52, %v42, 0
    %101 = vmatprep.subr.mxu0 0.0
    %102 = vmatpush1.msra.mxu0 %v43
    %103 = vmatprep.subr.mxu0 0.0
    %104 = vmatpush1.msra.mxu0 %v44
    %105 = vmatprep.subr.mxu0 0.0
    %106 = vmatpush1.msra.mxu0 0.0
    %107 = vmatprep.subr.mxu0 0.0
    %108 = vmatpush1.msra.mxu0 0.0
    %109 = vmatprep.subr.mxu0 0.0
    %110 = vmatpush1.msra.mxu0 0.0
    %111 = vmatprep.subr.mxu0 0.0
    %112 = vmatpush1.msra.mxu0 0.0
    %113 = vmatprep.subr.mxu0 0.0
    %114 = vmatpush1.msra.mxu0 0.0
    %115 = vmatprep.subr.mxu0 0.0
    %116 = vmatpush1.msra.mxu0 0.0
    %117 = vmatprep.subr.mxu0 0.0
    %118 = vmatpush1.msra.mxu0 0.0
    %119 = vmatprep.subr.mxu0 0.0
    %120 = vmatpush1.msra.mxu0 0.0
    %121 = vmatprep.subr.mxu0 0.0
    %122 = vmatpush1.msra.mxu0 0.0
    %123 = vmatprep.subr.mxu0 0.0
    %124 = vmatpush1.msra.mxu0 0.0
    %125 = vmatprep.subr.mxu0 0.0
    %126 = vmatpush1.msra.mxu0 0.0
    %127 = vmatprep.subr.mxu0 0.0
    %128 = vmatpush1.msra.mxu0 0.0
    %129 = vmatprep.subr.mxu0 0.0
    %130 = vmatpush1.msra.mxu0 0.0
    %131 = vmatprep.subr.mxu0 0.0
    %132 = vmatpush1.msra.mxu0 0.0
    %133 = vmatprep.subr.mxu0 0.0
    %134 = vmatpush1.msra.mxu0 0.0
    %135 = vmatprep.subr.mxu0 0.0
    %136 = vmatpush1.msra.mxu0 0.0
    %137 = vmatprep.subr.mxu0 0.0
    %138 = vmatpush1.msra.mxu0 0.0
    %139 = vmatprep.subr.mxu0 0.0
    %140 = vmatpush1.msra.mxu0 0.0
    %141 = vmatprep.subr.mxu0 0.0
    %142 = vmatpush1.msra.mxu0 0.0
    %143 = vmatprep.subr.mxu0 0.0
    %144 = vmatpush1.msra.mxu0 0.0
    %145 = vmatprep.subr.mxu0 0.0
    %146 = vmatpush1.msra.mxu0 0.0
    %147 = vmatprep.subr.mxu0 0.0
    %148 = vmatpush1.msra.mxu0 0.0
    %149 = vmatprep.subr.mxu0 0.0
    %150 = vmatpush1.msra.mxu0 0.0
    %151 = vmatprep.subr.mxu0 0.0
    %152 = vmatpush1.msra.mxu0 0.0
    %153 = vmatprep.subr.mxu0 0.0
    %154 = vmatpush1.msra.mxu0 0.0
    %155 = vmatprep.subr.mxu0 0.0
    %156 = vmatpush1.msra.mxu0 0.0
    %157 = vmatprep.subr.mxu0 0.0
    %158 = vmatpush1.msra.mxu0 0.0
    %159 = vmatprep.subr.mxu0 0.0
    %160 = vmatpush1.msra.mxu0 0.0
    %161 = vmatprep.subr.mxu0 0.0
    %162 = vmatpush1.msra.mxu0 0.0
    %163 = vmatprep.subr.mxu0 0.0
    %164 = vmatpush1.msra.mxu0 0.0
    %165 = vmatprep.mubr.f32.mxu0 0.0
    %166 = vmatmul.mubr.f32.gmra.mrb[0].mxu0 %v54
    %v167 = vpop.f32.mrb[0].mxu0
    %v168 = vadd.f32 %v50, %v167
    %v169 = vpop.f32.mrb[0].mxu0
    %170 = vmatprep.mubr.f32.mxu0 0.0
    %171 = vmatmul.mubr.f32.gmra.mrb[0].mxu0 %v57
    %v172 = vpop.f32.mrb[0].mxu0
    %v173 = vadd.f32 %v50, %v172
    %v174 = vpop.f32.mrb[0].mxu0
    %175 = vmatprep.mubr.f32.mxu0 0.0
    %176 = vmatmul.mubr.f32.gmra.mrb[0].mxu0 %v60
    %v177 = vpop.f32.mrb[0].mxu0
    %v178 = vadd.f32 %v50, %v177
    %v179 = vpop.f32.mrb[0].mxu0
    %180 = vmatprep.mubr.f32.mxu0 0.0
    %181 = vmatmul.mubr.f32.gmra.mrb[0].mxu0 %v63
    %v182 = vpop.f32.mrb[0].mxu0
    %v183 = vadd.f32 %v50, %v182
    %v184 = vpop.f32.mrb[0].mxu0
    %185 = vmatprep.mubr.f32.mxu0 0.0
    %186 = vmatmul.mubr.f32.gmra.mrb[0].mxu0 %v66
    %v187 = vpop.f32.mrb[0].mxu0
    %v188 = vadd.f32 %v50, %v187
    %v189 = vpop.f32.mrb[0].mxu0
    %190 = vmatprep.mubr.f32.mxu0 0.0
    %191 = vmatmul.mubr.f32.gmra.mrb[0].mxu0 %v69
    %v192 = vpop.f32.mrb[0].mxu0
    %v193 = vadd.f32 %v50, %v192
    %v194 = vpop.f32.mrb[0].mxu0
    %195 = vmatprep.mubr.f32.mxu0 0.0
    %196 = vmatmul.mubr.f32.gmra.mrb[0].mxu0 %v72
    %v197 = vpop.f32.mrb[0].mxu0
    %v198 = vadd.f32 %v50, %v197
    %v199 = vpop.f32.mrb[0].mxu0
    %200 = vmatprep.mubr.f32.mxu0 0.0
    %201 = vmatmul.mubr.f32.gmra.mrb[0].mxu0 %v75
    %v202 = vpop.f32.mrb[0].mxu0
    %v203 = vadd.f32 %v50, %v202
    %v204 = vpop.f32.mrb[0].mxu0
    %205 = vmatprep.mubr.f32.mxu0 0.0
    %206 = vmatmul.mubr.f32.gmra.mrb[0].mxu0 %v78
    %v207 = vpop.f32.mrb[0].mxu0
    %v208 = vadd.f32 %v50, %v207
    %v209 = vpop.f32.mrb[0].mxu0
    %210 = vmatprep.mubr.f32.mxu0 0.0
    %211 = vmatmul.mubr.f32.gmra.mrb[0].mxu0 %v81
    %v212 = vpop.f32.mrb[0].mxu0
    %v213 = vadd.f32 %v50, %v212
    %v214 = vpop.f32.mrb[0].mxu0
    %215 = vmatprep.mubr.f32.mxu0 0.0
    %216 = vmatmul.mubr.f32.gmra.mrb[0].mxu0 %v84
    %v217 = vpop.f32.mrb[0].mxu0
    %v218 = vadd.f32 %v50, %v217
    %v219 = vpop.f32.mrb[0].mxu0
    %220 = vmatprep.mubr.f32.mxu0 0.0
    %221 = vmatmul.mubr.f32.gmra.mrb[0].mxu0 %v87
    %v222 = vpop.f32.mrb[0].mxu0
    %v223 = vadd.f32 %v50, %v222
    %v224 = vpop.f32.mrb[0].mxu0
    %225 = vmatprep.mubr.f32.mxu0 0.0
    %226 = vmatmul.mubr.f32.gmra.mrb[0].mxu0 %v90
    %v227 = vpop.f32.mrb[0].mxu0
    %v228 = vadd.f32 %v50, %v227
    %v229 = vpop.f32.mrb[0].mxu0
    %230 = vmatprep.mubr.f32.mxu0 0.0
    %231 = vmatmul.mubr.f32.gmra.mrb[0].mxu0 %v93
    %v232 = vpop.f32.mrb[0].mxu0
    %v233 = vadd.f32 %v50, %v232
    %v234 = vpop.f32.mrb[0].mxu0
    %235 = vmatprep.mubr.f32.mxu0 0.0
    %236 = vmatmul.mubr.f32.gmra.mrb[0].mxu0 %v96
    %v237 = vpop.f32.mrb[0].mxu0
    %v238 = vadd.f32 %v50, %v237
    %v239 = vpop.f32.mrb[0].mxu0
    %240 = vmatprep.mubr.f32.mxu0 0.0
    %241 = vmatmul.mubr.f32.gmra.mrb[0].mxu0 %v99
    %v242 = vpop.f32.mrb[0].mxu0
    %v243 = vadd.f32 %v50, %v242
    %v244 = vpop.f32.mrb[0].mxu0
    %245 = vdwg.mxu0
    %v246 = vmul.f32 %v168, 0.5
    %v247 = vmul.f32 %v173, 0.5
    %v248 = vmul.f32 %v178, 0.5
    %v249 = vmul.f32 %v183, 0.5
    %v250 = vmul.f32 %v188, 0.5
    %v251 = vmul.f32 %v193, 0.5
    %v252 = vmul.f32 %v198, 0.5
    %v253 = vmul.f32 %v203, 0.5
    %v254 = vmul.f32 %v208, 0.5
    %v255 = vmul.f32 %v213, 0.5
    %v256 = vmul.f32 %v218, 0.5
    %v257 = vmul.f32 %v223, 0.5
    %v258 = vmul.f32 %v228, 0.5
    %v259 = vmul.f32 %v233, 0.5
    %v260 = vmul.f32 %v238, 0.5
    %v261 = vmul.f32 %v243, 0.5
    %v262 = vmul.f32 %v168, 0.044715
    %v263 = vmul.f32 %v173, 0.044715
    %v264 = vmul.f32 %v178, 0.044715
    %v265 = vmul.f32 %v183, 0.044715
    %v266 = vmul.f32 %v188, 0.044715
    %v267 = vmul.f32 %v193, 0.044715
    %v268 = vmul.f32 %v198, 0.044715
    %v269 = vmul.f32 %v203, 0.044715
    %v270 = vmul.f32 %v208, 0.044715
    %v271 = vmul.f32 %v213, 0.044715
    %v272 = vmul.f32 %v218, 0.044715
    %v273 = vmul.f32 %v223, 0.044715
    %v274 = vmul.f32 %v228, 0.044715
    %v275 = vmul.f32 %v233, 0.044715
    %v276 = vmul.f32 %v238, 0.044715
    %v277 = vmul.f32 %v243, 0.044715
    %v278 = vmul.f32 %v262, %v168
    %v279 = vmul.f32 %v263, %v173
    %v280 = vmul.f32 %v264, %v178
    %v281 = vmul.f32 %v265, %v183
    %v282 = vmul.f32 %v266, %v188
    %v283 = vmul.f32 %v267, %v193
    %v284 = vmul.f32 %v268, %v198
    %v285 = vmul.f32 %v269, %v203
    %v286 = vmul.f32 %v270, %v208
    %v287 = vmul.f32 %v271, %v213
    %v288 = vmul.f32 %v272, %v218
    %v289 = vmul.f32 %v273, %v223
    %v290 = vmul.f32 %v274, %v228
    %v291 = vmul.f32 %v275, %v233
    %v292 = vmul.f32 %v276, %v238
    %v293 = vmul.f32 %v277, %v243
    %v294 = vmul.f32 %v278, %v168
    %v295 = vmul.f32 %v279, %v173
    %v296 = vmul.f32 %v280, %v178
    %v297 = vmul.f32 %v281, %v183
    %v298 = vmul.f32 %v282, %v188
    %v299 = vmul.f32 %v283, %v193
    %v300 = vmul.f32 %v284, %v198
    %v301 = vmul.f32 %v285, %v203
    %v302 = vmul.f32 %v286, %v208
    %v303 = vmul.f32 %v287, %v213
    %v304 = vmul.f32 %v288, %v218
    %v305 = vmul.f32 %v289, %v223
    %v306 = vmul.f32 %v290, %v228
    %v307 = vmul.f32 %v291, %v233
    %v308 = vmul.f32 %v292, %v238
    %v309 = vmul.f32 %v293, %v243
    %v310 = vadd.f32 %v168, %v294
    %v311 = vadd.f32 %v173, %v295
    %v312 = vadd.f32 %v178, %v296
    %v313 = vadd.f32 %v183, %v297
    %v314 = vadd.f32 %v188, %v298
    %v315 = vadd.f32 %v193, %v299
    %v316 = vadd.f32 %v198, %v300
    %v317 = vadd.f32 %v203, %v301
    %v318 = vadd.f32 %v208, %v302
    %v319 = vadd.f32 %v213, %v303
    %v320 = vadd.f32 %v218, %v304
    %v321 = vadd.f32 %v223, %v305
    %v322 = vadd.f32 %v228, %v306
    %v323 = vadd.f32 %v233, %v307
    %v324 = vadd.f32 %v238, %v308
    %v325 = vadd.f32 %v243, %v309
    %v326 = vmul.f32 %v310, 0.7978846
    %v327 = vmul.f32 %v311, 0.7978846
    %v328 = vmul.f32 %v312, 0.7978846
    %v329 = vmul.f32 %v313, 0.7978846
    %v330 = vmul.f32 %v314, 0.7978846
    %v331 = vmul.f32 %v315, 0.7978846
    %v332 = vmul.f32 %v316, 0.7978846
    %v333 = vmul.f32 %v317, 0.7978846
    %v334 = vmul.f32 %v318, 0.7978846
    %v335 = vmul.f32 %v319, 0.7978846
    %v336 = vmul.f32 %v320, 0.7978846
    %v337 = vmul.f32 %v321, 0.7978846
    %v338 = vmul.f32 %v322, 0.7978846
    %v339 = vmul.f32 %v323, 0.7978846
    %v340 = vmul.f32 %v324, 0.7978846
    %v341 = vmul.f32 %v325, 0.7978846
    %v342 = vtanh.pop %v326
    %v343 = vtanh.pop %v327
    %v344 = vtanh.pop %v328
    %v345 = vtanh.pop %v329
    %v346 = vtanh.pop %v330
    %v347 = vtanh.pop %v331
    %v348 = vtanh.pop %v332
    %v349 = vtanh.pop %v333
    %v350 = vtanh.pop %v334
    %v351 = vtanh.pop %v335
    %v352 = vtanh.pop %v336
    %v353 = vtanh.pop %v337
    %v354 = vtanh.pop %v338
    %v355 = vtanh.pop %v339
    %v356 = vtanh.pop %v340
    %v357 = vtanh.pop %v341
    %v358 = vadd.f32 %v342, 1.0
    %v359 = vadd.f32 %v343, 1.0
    %v360 = vadd.f32 %v344, 1.0
    %v361 = vadd.f32 %v345, 1.0
    %v362 = vadd.f32 %v346, 1.0
    %v363 = vadd.f32 %v347, 1.0
    %v364 = vadd.f32 %v348, 1.0
    %v365 = vadd.f32 %v349, 1.0
    %v366 = vadd.f32 %v350, 1.0
    %v367 = vadd.f32 %v351, 1.0
    %v368 = vadd.f32 %v352, 1.0
    %v369 = vadd.f32 %v353, 1.0
    %v370 = vadd.f32 %v354, 1.0
    %v371 = vadd.f32 %v355, 1.0
    %v372 = vadd.f32 %v356, 1.0
    %v373 = vadd.f32 %v357, 1.0
    %v374 = vmul.f32 %v246, %v358
    %v375 = vmul.f32 %v247, %v359
    %v376 = vmul.f32 %v248, %v360
    %v377 = vmul.f32 %v249, %v361
    %v378 = vmul.f32 %v250, %v362
    %v379 = vmul.f32 %v251, %v363
    %v380 = vmul.f32 %v252, %v364
    %v381 = vmul.f32 %v253, %v365
    %v382 = vmul.f32 %v254, %v366
    %v383 = vmul.f32 %v255, %v367
    %v384 = vmul.f32 %v256, %v368
    %v385 = vmul.f32 %v257, %v369
    %v386 = vmul.f32 %v258, %v370
    %v387 = vmul.f32 %v259, %v371
    %v388 = vmul.f32 %v260, %v372
    %v389 = vmul.f32 %v261, %v373
    %vm390 = vcmask 261120
    %391 = vst.msk [vmem:[#allocation2] sm:$0xff] %vm390, 0.0
    %vm392 = vcmask 254976
    %393 = vst.msk [vmem:[#allocation2 + $0x8] sm:$0x3] %vm392, 0.0
    %394 = vst.msk [vmem:[#allocation2 + $0x10] sm:$0xff] %vm390, 0.0
    %395 = vst.msk [vmem:[#allocation2 + $0x18] sm:$0x3] %vm392, 0.0
    %396 = vst.msk [vmem:[#allocation2 + $0x20] sm:$0xff] %vm390, 0.0
    %397 = vst.msk [vmem:[#allocation2 + $0x28] sm:$0x3] %vm392, 0.0
    %398 = vst.msk [vmem:[#allocation2 + $0x30] sm:$0xff] %vm390, 0.0
    %399 = vst.msk [vmem:[#allocation2 + $0x38] sm:$0x3] %vm392, 0.0
    %400 = vst.msk [vmem:[#allocation2 + $0x40] sm:$0xff] %vm390, 0.0
    %401 = vst.msk [vmem:[#allocation2 + $0x48] sm:$0x3] %vm392, 0.0
    %402 = vst.msk [vmem:[#allocation2 + $0x50] sm:$0xff] %vm390, 0.0
    %403 = vst.msk [vmem:[#allocation2 + $0x58] sm:$0x3] %vm392, 0.0
    %404 = vst.msk [vmem:[#allocation2 + $0x60] sm:$0xff] %vm390, 0.0
    %405 = vst.msk [vmem:[#allocation2 + $0x68] sm:$0x3] %vm392, 0.0
    %406 = vst.msk [vmem:[#allocation2 + $0x70] sm:$0xff] %vm390, 0.0
    %407 = vst.msk [vmem:[#allocation2 + $0x78] sm:$0x3] %vm392, 0.0
    %408 = vst.msk [vmem:[#allocation2 + $0x80] sm:$0xff] %vm390, 0.0
    %409 = vst.msk [vmem:[#allocation2 + $0x88] sm:$0x3] %vm392, 0.0
    %410 = vst.msk [vmem:[#allocation2 + $0x90] sm:$0xff] %vm390, 0.0
    %411 = vst.msk [vmem:[#allocation2 + $0x98] sm:$0x3] %vm392, 0.0
    %412 = vst.msk [vmem:[#allocation2 + $0xa0] sm:$0xff] %vm390, 0.0
    %413 = vst.msk [vmem:[#allocation2 + $0xa8] sm:$0x3] %vm392, 0.0
    %414 = vst.msk [vmem:[#allocation2 + $0xb0] sm:$0xff] %vm390, 0.0
    %415 = vst.msk [vmem:[#allocation2 + $0xb8] sm:$0x3] %vm392, 0.0
    %416 = vst.msk [vmem:[#allocation2 + $0xc0] sm:$0xff] %vm390, 0.0
    %417 = vst.msk [vmem:[#allocation2 + $0xc8] sm:$0x3] %vm392, 0.0
    %418 = vst.msk [vmem:[#allocation2 + $0xd0] sm:$0xff] %vm390, 0.0
    %419 = vst.msk [vmem:[#allocation2 + $0xd8] sm:$0x3] %vm392, 0.0
    %420 = vst.msk [vmem:[#allocation2 + $0xe0] sm:$0xff] %vm390, 0.0
    %421 = vst.msk [vmem:[#allocation2 + $0xe8] sm:$0x3] %vm392, 0.0
    %422 = vst.msk [vmem:[#allocation2 + $0xf0] sm:$0xff] %vm390, 0.0
    %423 = vst.msk [vmem:[#allocation2 + $0xf8] sm:$0x3] %vm392, 0.0
    %424 = vst.msk [vmem:[#allocation2 + $0x100] sm:$0xff] %vm390, 0.0
    %425 = vst.msk [vmem:[#allocation2 + $0x108] sm:$0x3] %vm392, 0.0
    %426 = vst.msk [vmem:[#allocation2 + $0x110] sm:$0xff] %vm390, 0.0
    %427 = vst.msk [vmem:[#allocation2 + $0x118] sm:$0x3] %vm392, 0.0
    %428 = vst.msk [vmem:[#allocation2 + $0x120] sm:$0xff] %vm390, 0.0
    %429 = vst.msk [vmem:[#allocation2 + $0x128] sm:$0x3] %vm392, 0.0
    %430 = vst.msk [vmem:[#allocation2 + $0x130] sm:$0xff] %vm390, 0.0
    %431 = vst.msk [vmem:[#allocation2 + $0x138] sm:$0x3] %vm392, 0.0
    %s432 = scalar_lea.vmem [#allocation2], 16
    %433 = vst.msk [vmem:[%s432 + $0x1] sm:$0xff] %vm390, %v374
    %434 = vst.msk [vmem:[%s432 + $0x11] sm:$0xff] %vm390, %v375
    %435 = vst.msk [vmem:[%s432 + $0x21] sm:$0xff] %vm390, %v376
    %436 = vst.msk [vmem:[%s432 + $0x31] sm:$0xff] %vm390, %v377
    %437 = vst.msk [vmem:[%s432 + $0x41] sm:$0xff] %vm390, %v378
    %438 = vst.msk [vmem:[%s432 + $0x51] sm:$0xff] %vm390, %v379
    %439 = vst.msk [vmem:[%s432 + $0x61] sm:$0xff] %vm390, %v380
    %440 = vst.msk [vmem:[%s432 + $0x71] sm:$0xff] %vm390, %v381
    %441 = vst.msk [vmem:[%s432 + $0xa1] sm:$0xff] %vm390, %v382
    %442 = vst.msk [vmem:[%s432 + $0xb1] sm:$0xff] %vm390, %v383
    %443 = vst.msk [vmem:[%s432 + $0xc1] sm:$0xff] %vm390, %v384
    %444 = vst.msk [vmem:[%s432 + $0xd1] sm:$0xff] %vm390, %v385
    %445 = vst.msk [vmem:[%s432 + $0xe1] sm:$0xff] %vm390, %v386
    %446 = vst.msk [vmem:[%s432 + $0xf1] sm:$0xff] %vm390, %v387
    %447 = vst.msk [vmem:[%s432 + $0x101] sm:$0xff] %vm390, %v388
    %448 = vst.msk [vmem:[%s432 + $0x111] sm:$0xff] %vm390, %v389
    %v449 = vld [vmem:[%s3] sm:$0xff]
    %v450 = vld [vmem:[%s3 + $0x8] sm:$0x1]
    %v451 = vld [vmem:[#allocation2] sm:$0xff]
    %v452 = vld [vmem:[#allocation2 + $0x10] sm:$0xff]
    %v453 = vld [vmem:[#allocation2 + $0x20] sm:$0xff]
    %v454 = vld [vmem:[#allocation2 + $0x30] sm:$0xff]
    %v455 = vld [vmem:[#allocation2 + $0x40] sm:$0xff]
    %v456 = vld [vmem:[#allocation2 + $0x50] sm:$0xff]
    %v457 = vld [vmem:[#allocation2 + $0x60] sm:$0xff]
    %v458 = vld [vmem:[#allocation2 + $0x70] sm:$0xff]
    %v459 = vld [vmem:[#allocation2 + $0xa0] sm:$0xff]
    %v460 = vld [vmem:[#allocation2 + $0xb0] sm:$0xff]
    %v461 = vld [vmem:[#allocation2 + $0xc0] sm:$0xff]
    %v462 = vld [vmem:[#allocation2 + $0xd0] sm:$0xff]
    %v463 = vld [vmem:[#allocation2 + $0xe0] sm:$0xff]
    %v464 = vld [vmem:[#allocation2 + $0xf0] sm:$0xff]
    %v465 = vld [vmem:[#allocation2 + $0x100] sm:$0xff]
    %v466 = vld [vmem:[#allocation2 + $0x110] sm:$0xff]
    %v467 = vlaneseq
    %v468 = vshrl.u32 %v467, 7
    %v469 = vsub.s32 0, %v468
    %v470 = vrot.slane %v449, %v469
    %v471 = vmul.f32 %v451, %v470
    %v472 = vmul.f32 %v452, %v470
    %v473 = vmul.f32 %v453, %v470
    %v474 = vmul.f32 %v454, %v470
    %v475 = vmul.f32 %v455, %v470
    %v476 = vmul.f32 %v456, %v470
    %v477 = vmul.f32 %v457, %v470
    %v478 = vmul.f32 %v458, %v470
    %v479 = vmul.f32 %v459, %v470
    %v480 = vmul.f32 %v460, %v470
    %v481 = vmul.f32 %v461, %v470
    %v482 = vmul.f32 %v462, %v470
    %v483 = vmul.f32 %v463, %v470
    %v484 = vmul.f32 %v464, %v470
    %v485 = vmul.f32 %v465, %v470
    %v486 = vmul.f32 %v466, %v470
    %v487 = vadd.f32 %v471, 0.0
    %v488 = vadd.f32 %v472, 0.0
    %v489 = vadd.f32 %v473, 0.0
    %v490 = vadd.f32 %v474, 0.0
    %v491 = vadd.f32 %v475, 0.0
    %v492 = vadd.f32 %v476, 0.0
    %v493 = vadd.f32 %v477, 0.0
    %v494 = vadd.f32 %v478, 0.0
    %v495 = vadd.f32 %v479, 0.0
    %v496 = vadd.f32 %v480, 0.0
    %v497 = vadd.f32 %v481, 0.0
    %v498 = vadd.f32 %v482, 0.0
    %v499 = vadd.f32 %v483, 0.0
    %v500 = vadd.f32 %v484, 0.0
    %v501 = vadd.f32 %v485, 0.0
    %v502 = vadd.f32 %v486, 0.0
    %v503 = vld [vmem:[#allocation2 + $0x1] sm:$0xff]
    %v504 = vld [vmem:[#allocation2 + $0x11] sm:$0xff]
    %v505 = vld [vmem:[#allocation2 + $0x21] sm:$0xff]
    %v506 = vld [vmem:[#allocation2 + $0x31] sm:$0xff]
    %v507 = vld [vmem:[#allocation2 + $0x41] sm:$0xff]
    %v508 = vld [vmem:[#allocation2 + $0x51] sm:$0xff]
    %v509 = vld [vmem:[#allocation2 + $0x61] sm:$0xff]
    %v510 = vld [vmem:[#allocation2 + $0x71] sm:$0xff]
    %v511 = vld [vmem:[#allocation2 + $0xa1] sm:$0xff]
    %v512 = vld [vmem:[#allocation2 + $0xb1] sm:$0xff]
    %v513 = vld [vmem:[#allocation2 + $0xc1] sm:$0xff]
    %v514 = vld [vmem:[#allocation2 + $0xd1] sm:$0xff]
    %v515 = vld [vmem:[#allocation2 + $0xe1] sm:$0xff]
    %v516 = vld [vmem:[#allocation2 + $0xf1] sm:$0xff]
    %v517 = vld [vmem:[#allocation2 + $0x101] sm:$0xff]
    %v518 = vld [vmem:[#allocation2 + $0x111] sm:$0xff]
    %v519 = vlaneseq
    %v520 = vshrl.u32 %v519, 7
    %v521 = vsub.s32 1, %v520
    %v522 = vrot.slane %v449, %v521
    %v523 = vmul.f32 %v503, %v522
    %v524 = vmul.f32 %v504, %v522
    %v525 = vmul.f32 %v505, %v522
    %v526 = vmul.f32 %v506, %v522
    %v527 = vmul.f32 %v507, %v522
    %v528 = vmul.f32 %v508, %v522
    %v529 = vmul.f32 %v509, %v522
    %v530 = vmul.f32 %v510, %v522
    %v531 = vmul.f32 %v511, %v522
    %v532 = vmul.f32 %v512, %v522
    %v533 = vmul.f32 %v513, %v522
    %v534 = vmul.f32 %v514, %v522
    %v535 = vmul.f32 %v515, %v522
    %v536 = vmul.f32 %v516, %v522
    %v537 = vmul.f32 %v517, %v522
    %v538 = vmul.f32 %v518, %v522
    %v539 = vadd.f32 %v487, %v523
    %v540 = vadd.f32 %v488, %v524
    %v541 = vadd.f32 %v489, %v525
    %v542 = vadd.f32 %v490, %v526
    %v543 = vadd.f32 %v491, %v527
    %v544 = vadd.f32 %v492, %v528
    %v545 = vadd.f32 %v493, %v529
    %v546 = vadd.f32 %v494, %v530
    %v547 = vadd.f32 %v495, %v531
    %v548 = vadd.f32 %v496, %v532
    %v549 = vadd.f32 %v497, %v533
    %v550 = vadd.f32 %v498, %v534
    %v551 = vadd.f32 %v499, %v535
    %v552 = vadd.f32 %v500, %v536
    %v553 = vadd.f32 %v501, %v537
    %v554 = vadd.f32 %v502, %v538
    %v555 = vld [vmem:[#allocation2 + $0x2] sm:$0xff]
    %v556 = vld [vmem:[#allocation2 + $0x12] sm:$0xff]
    %v557 = vld [vmem:[#allocation2 + $0x22] sm:$0xff]
    %v558 = vld [vmem:[#allocation2 + $0x32] sm:$0xff]
    %v559 = vld [vmem:[#allocation2 + $0x42] sm:$0xff]
    %v560 = vld [vmem:[#allocation2 + $0x52] sm:$0xff]
    %v561 = vld [vmem:[#allocation2 + $0x62] sm:$0xff]
    %v562 = vld [vmem:[#allocation2 + $0x72] sm:$0xff]
    %v563 = vld [vmem:[#allocation2 + $0xa2] sm:$0xff]
    %v564 = vld [vmem:[#allocation2 + $0xb2] sm:$0xff]
    %v565 = vld [vmem:[#allocation2 + $0xc2] sm:$0xff]
    %v566 = vld [vmem:[#allocation2 + $0xd2] sm:$0xff]
    %v567 = vld [vmem:[#allocation2 + $0xe2] sm:$0xff]
    %v568 = vld [vmem:[#allocation2 + $0xf2] sm:$0xff]
    %v569 = vld [vmem:[#allocation2 + $0x102] sm:$0xff]
    %v570 = vld [vmem:[#allocation2 + $0x112] sm:$0xff]
    %v571 = vlaneseq
    %v572 = vshrl.u32 %v571, 7
    %v573 = vsub.s32 2, %v572
    %v574 = vrot.slane %v449, %v573
    %v575 = vmul.f32 %v555, %v574
    %v576 = vmul.f32 %v556, %v574
    %v577 = vmul.f32 %v557, %v574
    %v578 = vmul.f32 %v558, %v574
    %v579 = vmul.f32 %v559, %v574
    %v580 = vmul.f32 %v560, %v574
    %v581 = vmul.f32 %v561, %v574
    %v582 = vmul.f32 %v562, %v574
    %v583 = vmul.f32 %v563, %v574
    %v584 = vmul.f32 %v564, %v574
    %v585 = vmul.f32 %v565, %v574
    %v586 = vmul.f32 %v566, %v574
    %v587 = vmul.f32 %v567, %v574
    %v588 = vmul.f32 %v568, %v574
    %v589 = vmul.f32 %v569, %v574
    %v590 = vmul.f32 %v570, %v574
    %v591 = vadd.f32 %v539, %v575
    %v592 = vadd.f32 %v540, %v576
    %v593 = vadd.f32 %v541, %v577
    %v594 = vadd.f32 %v542, %v578
    %v595 = vadd.f32 %v543, %v579
    %v596 = vadd.f32 %v544, %v580
    %v597 = vadd.f32 %v545, %v581
    %v598 = vadd.f32 %v546, %v582
    %v599 = vadd.f32 %v547, %v583
    %v600 = vadd.f32 %v548, %v584
    %v601 = vadd.f32 %v549, %v585
    %v602 = vadd.f32 %v550, %v586
    %v603 = vadd.f32 %v551, %v587
    %v604 = vadd.f32 %v552, %v588
    %v605 = vadd.f32 %v553, %v589
    %v606 = vadd.f32 %v554, %v590
    %v607 = vld [vmem:[%s432] sm:$0xff]
    %v608 = vld [vmem:[%s432 + $0x10] sm:$0xff]
    %v609 = vld [vmem:[%s432 + $0x20] sm:$0xff]
    %v610 = vld [vmem:[%s432 + $0x30] sm:$0xff]
    %v611 = vld [vmem:[%s432 + $0x40] sm:$0xff]
    %v612 = vld [vmem:[%s432 + $0x50] sm:$0xff]
    %v613 = vld [vmem:[%s432 + $0x60] sm:$0xff]
    %v614 = vld [vmem:[%s432 + $0x70] sm:$0xff]
    %v615 = vld [vmem:[%s432 + $0xa0] sm:$0xff]
    %v616 = vld [vmem:[%s432 + $0xb0] sm:$0xff]
    %v617 = vld [vmem:[%s432 + $0xc0] sm:$0xff]
    %v618 = vld [vmem:[%s432 + $0xd0] sm:$0xff]
    %v619 = vld [vmem:[%s432 + $0xe0] sm:$0xff]
    %v620 = vld [vmem:[%s432 + $0xf0] sm:$0xff]
    %v621 = vld [vmem:[%s432 + $0x100] sm:$0xff]
    %v622 = vld [vmem:[%s432 + $0x110] sm:$0xff]
    %v623 = vlaneseq
    %v624 = vshrl.u32 %v623, 7
    %v625 = vsub.s32 3, %v624
    %v626 = vrot.slane %v449, %v625
    %v627 = vmul.f32 %v607, %v626
    %v628 = vmul.f32 %v608, %v626
    %v629 = vmul.f32 %v609, %v626
    %v630 = vmul.f32 %v610, %v626
    %v631 = vmul.f32 %v611, %v626
    %v632 = vmul.f32 %v612, %v626
    %v633 = vmul.f32 %v613, %v626
    %v634 = vmul.f32 %v614, %v626
    %v635 = vmul.f32 %v615, %v626
    %v636 = vmul.f32 %v616, %v626
    %v637 = vmul.f32 %v617, %v626
    %v638 = vmul.f32 %v618, %v626
    %v639 = vmul.f32 %v619, %v626
    %v640 = vmul.f32 %v620, %v626
    %v641 = vmul.f32 %v621, %v626
    %v642 = vmul.f32 %v622, %v626
    %v643 = vadd.f32 %v591, %v627
    %v644 = vadd.f32 %v592, %v628
    %v645 = vadd.f32 %v593, %v629
    %v646 = vadd.f32 %v594, %v630
    %v647 = vadd.f32 %v595, %v631
    %v648 = vadd.f32 %v596, %v632
    %v649 = vadd.f32 %v597, %v633
    %v650 = vadd.f32 %v598, %v634
    %v651 = vadd.f32 %v599, %v635
    %v652 = vadd.f32 %v600, %v636
    %v653 = vadd.f32 %v601, %v637
    %v654 = vadd.f32 %v602, %v638
    %v655 = vadd.f32 %v603, %v639
    %v656 = vadd.f32 %v604, %v640
    %v657 = vadd.f32 %v605, %v641
    %v658 = vadd.f32 %v606, %v642
    %v659 = vld [vmem:[%s432 + $0x1] sm:$0xff]
    %v660 = vld [vmem:[%s432 + $0x11] sm:$0xff]
    %v661 = vld [vmem:[%s432 + $0x21] sm:$0xff]
    %v662 = vld [vmem:[%s432 + $0x31] sm:$0xff]
    %v663 = vld [vmem:[%s432 + $0x41] sm:$0xff]
    %v664 = vld [vmem:[%s432 + $0x51] sm:$0xff]
    %v665 = vld [vmem:[%s432 + $0x61] sm:$0xff]
    %v666 = vld [vmem:[%s432 + $0x71] sm:$0xff]
    %v667 = vld [vmem:[%s432 + $0xa1] sm:$0xff]
    %v668 = vld [vmem:[%s432 + $0xb1] sm:$0xff]
    %v669 = vld [vmem:[%s432 + $0xc1] sm:$0xff]
    %v670 = vld [vmem:[%s432 + $0xd1] sm:$0xff]
    %v671 = vld [vmem:[%s432 + $0xe1] sm:$0xff]
    %v672 = vld [vmem:[%s432 + $0xf1] sm:$0xff]
    %v673 = vld [vmem:[%s432 + $0x101] sm:$0xff]
    %v674 = vld [vmem:[%s432 + $0x111] sm:$0xff]
    %v675 = vlaneseq
    %v676 = vshrl.u32 %v675, 7
    %v677 = vsub.s32 4, %v676
    %v678 = vrot.slane %v449, %v677
    %v679 = vmul.f32 %v659, %v678
    %v680 = vmul.f32 %v660, %v678
    %v681 = vmul.f32 %v661, %v678
    %v682 = vmul.f32 %v662, %v678
    %v683 = vmul.f32 %v663, %v678
    %v684 = vmul.f32 %v664, %v678
    %v685 = vmul.f32 %v665, %v678
    %v686 = vmul.f32 %v666, %v678
    %v687 = vmul.f32 %v667, %v678
    %v688 = vmul.f32 %v668, %v678
    %v689 = vmul.f32 %v669, %v678
    %v690 = vmul.f32 %v670, %v678
    %v691 = vmul.f32 %v671, %v678
    %v692 = vmul.f32 %v672, %v678
    %v693 = vmul.f32 %v673, %v678
    %v694 = vmul.f32 %v674, %v678
    %v695 = vadd.f32 %v643, %v679
    %v696 = vadd.f32 %v644, %v680
    %v697 = vadd.f32 %v645, %v681
    %v698 = vadd.f32 %v646, %v682
    %v699 = vadd.f32 %v647, %v683
    %v700 = vadd.f32 %v648, %v684
    %v701 = vadd.f32 %v649, %v685
    %v702 = vadd.f32 %v650, %v686
    %v703 = vadd.f32 %v651, %v687
    %v704 = vadd.f32 %v652, %v688
    %v705 = vadd.f32 %v653, %v689
    %v706 = vadd.f32 %v654, %v690
    %v707 = vadd.f32 %v655, %v691
    %v708 = vadd.f32 %v656, %v692
    %v709 = vadd.f32 %v657, %v693
    %v710 = vadd.f32 %v658, %v694
    %v711 = vld [vmem:[%s432 + $0x2] sm:$0xff]
    %v712 = vld [vmem:[%s432 + $0x12] sm:$0xff]
    %v713 = vld [vmem:[%s432 + $0x22] sm:$0xff]
    %v714 = vld [vmem:[%s432 + $0x32] sm:$0xff]
    %v715 = vld [vmem:[%s432 + $0x42] sm:$0xff]
    %v716 = vld [vmem:[%s432 + $0x52] sm:$0xff]
    %v717 = vld [vmem:[%s432 + $0x62] sm:$0xff]
    %v718 = vld [vmem:[%s432 + $0x72] sm:$0xff]
    %v719 = vld [vmem:[%s432 + $0xa2] sm:$0xff]
    %v720 = vld [vmem:[%s432 + $0xb2] sm:$0xff]
    %v721 = vld [vmem:[%s432 + $0xc2] sm:$0xff]
    %v722 = vld [vmem:[%s432 + $0xd2] sm:$0xff]
    %v723 = vld [vmem:[%s432 + $0xe2] sm:$0xff]
    %v724 = vld [vmem:[%s432 + $0xf2] sm:$0xff]
    %v725 = vld [vmem:[%s432 + $0x102] sm:$0xff]
    %v726 = vld [vmem:[%s432 + $0x112] sm:$0xff]
    %v727 = vlaneseq
    %v728 = vshrl.u32 %v727, 7
    %v729 = vsub.s32 5, %v728
    %v730 = vrot.slane %v449, %v729
    %v731 = vmul.f32 %v711, %v730
    %v732 = vmul.f32 %v712, %v730
    %v733 = vmul.f32 %v713, %v730
    %v734 = vmul.f32 %v714, %v730
    %v735 = vmul.f32 %v715, %v730
    %v736 = vmul.f32 %v716, %v730
    %v737 = vmul.f32 %v717, %v730
    %v738 = vmul.f32 %v718, %v730
    %v739 = vmul.f32 %v719, %v730
    %v740 = vmul.f32 %v720, %v730
    %v741 = vmul.f32 %v721, %v730
    %v742 = vmul.f32 %v722, %v730
    %v743 = vmul.f32 %v723, %v730
    %v744 = vmul.f32 %v724, %v730
    %v745 = vmul.f32 %v725, %v730
    %v746 = vmul.f32 %v726, %v730
    %v747 = vadd.f32 %v695, %v731
    %v748 = vadd.f32 %v696, %v732
    %v749 = vadd.f32 %v697, %v733
    %v750 = vadd.f32 %v698, %v734
    %v751 = vadd.f32 %v699, %v735
    %v752 = vadd.f32 %v700, %v736
    %v753 = vadd.f32 %v701, %v737
    %v754 = vadd.f32 %v702, %v738
    %v755 = vadd.f32 %v703, %v739
    %v756 = vadd.f32 %v704, %v740
    %v757 = vadd.f32 %v705, %v741
    %v758 = vadd.f32 %v706, %v742
    %v759 = vadd.f32 %v707, %v743
    %v760 = vadd.f32 %v708, %v744
    %v761 = vadd.f32 %v709, %v745
    %v762 = vadd.f32 %v710, %v746
    %s763 = scalar_lea.vmem [#allocation2], 32
    %v764 = vld [vmem:[%s763] sm:$0xff]
    %v765 = vld [vmem:[%s763 + $0x10] sm:$0xff]
    %v766 = vld [vmem:[%s763 + $0x20] sm:$0xff]
    %v767 = vld [vmem:[%s763 + $0x30] sm:$0xff]
    %v768 = vld [vmem:[%s763 + $0x40] sm:$0xff]
    %v769 = vld [vmem:[%s763 + $0x50] sm:$0xff]
    %v770 = vld [vmem:[%s763 + $0x60] sm:$0xff]
    %v771 = vld [vmem:[%s763 + $0x70] sm:$0xff]
    %v772 = vld [vmem:[%s763 + $0xa0] sm:$0xff]
    %v773 = vld [vmem:[%s763 + $0xb0] sm:$0xff]
    %v774 = vld [vmem:[%s763 + $0xc0] sm:$0xff]
    %v775 = vld [vmem:[%s763 + $0xd0] sm:$0xff]
    %v776 = vld [vmem:[%s763 + $0xe0] sm:$0xff]
    %v777 = vld [vmem:[%s763 + $0xf0] sm:$0xff]
    %v778 = vld [vmem:[%s763 + $0x100] sm:$0xff]
    %v779 = vld [vmem:[%s763 + $0x110] sm:$0xff]
    %v780 = vlaneseq
    %v781 = vshrl.u32 %v780, 7
    %v782 = vsub.s32 6, %v781
    %v783 = vrot.slane %v449, %v782
    %v784 = vmul.f32 %v764, %v783
    %v785 = vmul.f32 %v765, %v783
    %v786 = vmul.f32 %v766, %v783
    %v787 = vmul.f32 %v767, %v783
    %v788 = vmul.f32 %v768, %v783
    %v789 = vmul.f32 %v769, %v783
    %v790 = vmul.f32 %v770, %v783
    %v791 = vmul.f32 %v771, %v783
    %v792 = vmul.f32 %v772, %v783
    %v793 = vmul.f32 %v773, %v783
    %v794 = vmul.f32 %v774, %v783
    %v795 = vmul.f32 %v775, %v783
    %v796 = vmul.f32 %v776, %v783
    %v797 = vmul.f32 %v777, %v783
    %v798 = vmul.f32 %v778, %v783
    %v799 = vmul.f32 %v779, %v783
    %v800 = vadd.f32 %v747, %v784
    %v801 = vadd.f32 %v748, %v785
    %v802 = vadd.f32 %v749, %v786
    %v803 = vadd.f32 %v750, %v787
    %v804 = vadd.f32 %v751, %v788
    %v805 = vadd.f32 %v752, %v789
    %v806 = vadd.f32 %v753, %v790
    %v807 = vadd.f32 %v754, %v791
    %v808 = vadd.f32 %v755, %v792
    %v809 = vadd.f32 %v756, %v793
    %v810 = vadd.f32 %v757, %v794
    %v811 = vadd.f32 %v758, %v795
    %v812 = vadd.f32 %v759, %v796
    %v813 = vadd.f32 %v760, %v797
    %v814 = vadd.f32 %v761, %v798
    %v815 = vadd.f32 %v762, %v799
    %v816 = vld [vmem:[%s763 + $0x1] sm:$0xff]
    %v817 = vld [vmem:[%s763 + $0x11] sm:$0xff]
    %v818 = vld [vmem:[%s763 + $0x21] sm:$0xff]
    %v819 = vld [vmem:[%s763 + $0x31] sm:$0xff]
    %v820 = vld [vmem:[%s763 + $0x41] sm:$0xff]
    %v821 = vld [vmem:[%s763 + $0x51] sm:$0xff]
    %v822 = vld [vmem:[%s763 + $0x61] sm:$0xff]
    %v823 = vld [vmem:[%s763 + $0x71] sm:$0xff]
    %v824 = vld [vmem:[%s763 + $0xa1] sm:$0xff]
    %v825 = vld [vmem:[%s763 + $0xb1] sm:$0xff]
    %v826 = vld [vmem:[%s763 + $0xc1] sm:$0xff]
    %v827 = vld [vmem:[%s763 + $0xd1] sm:$0xff]
    %v828 = vld [vmem:[%s763 + $0xe1] sm:$0xff]
    %v829 = vld [vmem:[%s763 + $0xf1] sm:$0xff]
    %v830 = vld [vmem:[%s763 + $0x101] sm:$0xff]
    %v831 = vld [vmem:[%s763 + $0x111] sm:$0xff]
    %v832 = vlaneseq
    %v833 = vshrl.u32 %v832, 7
    %v834 = vsub.s32 7, %v833
    %v835 = vrot.slane %v449, %v834
    %v836 = vmul.f32 %v816, %v835
    %v837 = vmul.f32 %v817, %v835
    %v838 = vmul.f32 %v818, %v835
    %v839 = vmul.f32 %v819, %v835
    %v840 = vmul.f32 %v820, %v835
    %v841 = vmul.f32 %v821, %v835
    %v842 = vmul.f32 %v822, %v835
    %v843 = vmul.f32 %v823, %v835
    %v844 = vmul.f32 %v824, %v835
    %v845 = vmul.f32 %v825, %v835
    %v846 = vmul.f32 %v826, %v835
    %v847 = vmul.f32 %v827, %v835
    %v848 = vmul.f32 %v828, %v835
    %v849 = vmul.f32 %v829, %v835
    %v850 = vmul.f32 %v830, %v835
    %v851 = vmul.f32 %v831, %v835
    %v852 = vadd.f32 %v800, %v836
    %v853 = vadd.f32 %v801, %v837
    %v854 = vadd.f32 %v802, %v838
    %v855 = vadd.f32 %v803, %v839
    %v856 = vadd.f32 %v804, %v840
    %v857 = vadd.f32 %v805, %v841
    %v858 = vadd.f32 %v806, %v842
    %v859 = vadd.f32 %v807, %v843
    %v860 = vadd.f32 %v808, %v844
    %v861 = vadd.f32 %v809, %v845
    %v862 = vadd.f32 %v810, %v846
    %v863 = vadd.f32 %v811, %v847
    %v864 = vadd.f32 %v812, %v848
    %v865 = vadd.f32 %v813, %v849
    %v866 = vadd.f32 %v814, %v850
    %v867 = vadd.f32 %v815, %v851
    %v868 = vld [vmem:[%s763 + $0x2] sm:$0xff]
    %v869 = vld [vmem:[%s763 + $0x12] sm:$0xff]
    %v870 = vld [vmem:[%s763 + $0x22] sm:$0xff]
    %v871 = vld [vmem:[%s763 + $0x32] sm:$0xff]
    %v872 = vld [vmem:[%s763 + $0x42] sm:$0xff]
    %v873 = vld [vmem:[%s763 + $0x52] sm:$0xff]
    %v874 = vld [vmem:[%s763 + $0x62] sm:$0xff]
    %v875 = vld [vmem:[%s763 + $0x72] sm:$0xff]
    %v876 = vld [vmem:[%s763 + $0xa2] sm:$0xff]
    %v877 = vld [vmem:[%s763 + $0xb2] sm:$0xff]
    %v878 = vld [vmem:[%s763 + $0xc2] sm:$0xff]
    %v879 = vld [vmem:[%s763 + $0xd2] sm:$0xff]
    %v880 = vld [vmem:[%s763 + $0xe2] sm:$0xff]
    %v881 = vld [vmem:[%s763 + $0xf2] sm:$0xff]
    %v882 = vld [vmem:[%s763 + $0x102] sm:$0xff]
    %v883 = vld [vmem:[%s763 + $0x112] sm:$0xff]
    %v884 = vlaneseq
    %v885 = vshrl.u32 %v884, 7
    %v886 = vsub.s32 0, %v885
    %v887 = vrot.slane %v450, %v886
    %v888 = vmul.f32 %v868, %v887
    %v889 = vmul.f32 %v869, %v887
    %v890 = vmul.f32 %v870, %v887
    %v891 = vmul.f32 %v871, %v887
    %v892 = vmul.f32 %v872, %v887
    %v893 = vmul.f32 %v873, %v887
    %v894 = vmul.f32 %v874, %v887
    %v895 = vmul.f32 %v875, %v887
    %v896 = vmul.f32 %v876, %v887
    %v897 = vmul.f32 %v877, %v887
    %v898 = vmul.f32 %v878, %v887
    %v899 = vmul.f32 %v879, %v887
    %v900 = vmul.f32 %v880, %v887
    %v901 = vmul.f32 %v881, %v887
    %v902 = vmul.f32 %v882, %v887
    %v903 = vmul.f32 %v883, %v887
    %v904 = vadd.f32 %v852, %v888
    %v905 = vadd.f32 %v853, %v889
    %v906 = vadd.f32 %v854, %v890
    %v907 = vadd.f32 %v855, %v891
    %v908 = vadd.f32 %v856, %v892
    %v909 = vadd.f32 %v857, %v893
    %v910 = vadd.f32 %v858, %v894
    %v911 = vadd.f32 %v859, %v895
    %v912 = vadd.f32 %v860, %v896
    %v913 = vadd.f32 %v861, %v897
    %v914 = vadd.f32 %v862, %v898
    %v915 = vadd.f32 %v863, %v899
    %v916 = vadd.f32 %v864, %v900
    %v917 = vadd.f32 %v865, %v901
    %v918 = vadd.f32 %v866, %v902
    %v919 = vadd.f32 %v867, %v903
    %v920 = vld [vmem:[%s4] sm:$0x1]
    %v922 = vlaneseq
    %v923 = vshrl.u32 %v922, 7
    %v924 = vsub.s32 0, %v923
    %v925 = vrot.slane %v920, %v924
    %v927 = vadd.f32 %v904, %v925
    %v928 = vadd.f32 %v905, %v925
    %v929 = vadd.f32 %v906, %v925
    %v930 = vadd.f32 %v907, %v925
    %v931 = vadd.f32 %v908, %v925
    %v932 = vadd.f32 %v909, %v925
    %v933 = vadd.f32 %v910, %v925
    %v934 = vadd.f32 %v911, %v925
    %v935 = vadd.f32 %v912, %v925
    %v936 = vadd.f32 %v913, %v925
    %v937 = vadd.f32 %v914, %v925
    %v938 = vadd.f32 %v915, %v925
    %v939 = vadd.f32 %v916, %v925
    %v940 = vadd.f32 %v917, %v925
    %v941 = vadd.f32 %v918, %v925
    %v942 = vadd.f32 %v919, %v925
    %v943 = vmul.f32 %v927, 0.5
    %v944 = vmul.f32 %v928, 0.5
    %v945 = vmul.f32 %v929, 0.5
    %v946 = vmul.f32 %v930, 0.5
    %v947 = vmul.f32 %v931, 0.5
    %v948 = vmul.f32 %v932, 0.5
    %v949 = vmul.f32 %v933, 0.5
    %v950 = vmul.f32 %v934, 0.5
    %v951 = vmul.f32 %v935, 0.5
    %v952 = vmul.f32 %v936, 0.5
    %v953 = vmul.f32 %v937, 0.5
    %v954 = vmul.f32 %v938, 0.5
    %v955 = vmul.f32 %v939, 0.5
    %v956 = vmul.f32 %v940, 0.5
    %v957 = vmul.f32 %v941, 0.5
    %v958 = vmul.f32 %v942, 0.5
    %v959 = vmul.f32 %v927, 0.044715
    %v960 = vmul.f32 %v928, 0.044715
    %v961 = vmul.f32 %v929, 0.044715
    %v962 = vmul.f32 %v930, 0.044715
    %v963 = vmul.f32 %v931, 0.044715
    %v964 = vmul.f32 %v932, 0.044715
    %v965 = vmul.f32 %v933, 0.044715
    %v966 = vmul.f32 %v934, 0.044715
    %v967 = vmul.f32 %v935, 0.044715
    %v968 = vmul.f32 %v936, 0.044715
    %v969 = vmul.f32 %v937, 0.044715
    %v970 = vmul.f32 %v938, 0.044715
    %v971 = vmul.f32 %v939, 0.044715
    %v972 = vmul.f32 %v940, 0.044715
    %v973 = vmul.f32 %v941, 0.044715
    %v974 = vmul.f32 %v942, 0.044715
    %v975 = vmul.f32 %v959, %v927
    %v976 = vmul.f32 %v960, %v928
    %v977 = vmul.f32 %v961, %v929
    %v978 = vmul.f32 %v962, %v930
    %v979 = vmul.f32 %v963, %v931
    %v980 = vmul.f32 %v964, %v932
    %v981 = vmul.f32 %v965, %v933
    %v982 = vmul.f32 %v966, %v934
    %v983 = vmul.f32 %v967, %v935
    %v984 = vmul.f32 %v968, %v936
    %v985 = vmul.f32 %v969, %v937
    %v986 = vmul.f32 %v970, %v938
    %v987 = vmul.f32 %v971, %v939
    %v988 = vmul.f32 %v972, %v940
    %v989 = vmul.f32 %v973, %v941
    %v990 = vmul.f32 %v974, %v942
    %v991 = vmul.f32 %v975, %v927
    %v992 = vmul.f32 %v976, %v928
    %v993 = vmul.f32 %v977, %v929
    %v994 = vmul.f32 %v978, %v930
    %v995 = vmul.f32 %v979, %v931
    %v996 = vmul.f32 %v980, %v932
    %v997 = vmul.f32 %v981, %v933
    %v998 = vmul.f32 %v982, %v934
    %v999 = vmul.f32 %v983, %v935
    %v1000 = vmul.f32 %v984, %v936
    %v1001 = vmul.f32 %v985, %v937
    %v1002 = vmul.f32 %v986, %v938
    %v1003 = vmul.f32 %v987, %v939
    %v1004 = vmul.f32 %v988, %v940
    %v1005 = vmul.f32 %v989, %v941
    %v1006 = vmul.f32 %v990, %v942
    %v1007 = vadd.f32 %v927, %v991
    %v1008 = vadd.f32 %v928, %v992
    %v1009 = vadd.f32 %v929, %v993
    %v1010 = vadd.f32 %v930, %v994
    %v1011 = vadd.f32 %v931, %v995
    %v1012 = vadd.f32 %v932, %v996
    %v1013 = vadd.f32 %v933, %v997
    %v1014 = vadd.f32 %v934, %v998
    %v1015 = vadd.f32 %v935, %v999
    %v1016 = vadd.f32 %v936, %v1000
    %v1017 = vadd.f32 %v937, %v1001
    %v1018 = vadd.f32 %v938, %v1002
    %v1019 = vadd.f32 %v939, %v1003
    %v1020 = vadd.f32 %v940, %v1004
    %v1021 = vadd.f32 %v941, %v1005
    %v1022 = vadd.f32 %v942, %v1006
    %v1023 = vmul.f32 %v1007, 0.7978846
    %v1024 = vmul.f32 %v1008, 0.7978846
    %v1025 = vmul.f32 %v1009, 0.7978846
    %v1026 = vmul.f32 %v1010, 0.7978846
    %v1027 = vmul.f32 %v1011, 0.7978846
    %v1028 = vmul.f32 %v1012, 0.7978846
    %v1029 = vmul.f32 %v1013, 0.7978846
    %v1030 = vmul.f32 %v1014, 0.7978846
    %v1031 = vmul.f32 %v1015, 0.7978846
    %v1032 = vmul.f32 %v1016, 0.7978846
    %v1033 = vmul.f32 %v1017, 0.7978846
    %v1034 = vmul.f32 %v1018, 0.7978846
    %v1035 = vmul.f32 %v1019, 0.7978846
    %v1036 = vmul.f32 %v1020, 0.7978846
    %v1037 = vmul.f32 %v1021, 0.7978846
    %v1038 = vmul.f32 %v1022, 0.7978846
    %v1039 = vtanh.pop %v1023
    %v1040 = vtanh.pop %v1024
    %v1041 = vtanh.pop %v1025
    %v1042 = vtanh.pop %v1026
    %v1043 = vtanh.pop %v1027
    %v1044 = vtanh.pop %v1028
    %v1045 = vtanh.pop %v1029
    %v1046 = vtanh.pop %v1030
    %v1047 = vtanh.pop %v1031
    %v1048 = vtanh.pop %v1032
    %v1049 = vtanh.pop %v1033
    %v1050 = vtanh.pop %v1034
    %v1051 = vtanh.pop %v1035
    %v1052 = vtanh.pop %v1036
    %v1053 = vtanh.pop %v1037
    %v1054 = vtanh.pop %v1038
    %v1055 = vadd.f32 %v1039, 1.0
    %v1056 = vadd.f32 %v1040, 1.0
    %v1057 = vadd.f32 %v1041, 1.0
    %v1058 = vadd.f32 %v1042, 1.0
    %v1059 = vadd.f32 %v1043, 1.0
    %v1060 = vadd.f32 %v1044, 1.0
    %v1061 = vadd.f32 %v1045, 1.0
    %v1062 = vadd.f32 %v1046, 1.0
    %v1063 = vadd.f32 %v1047, 1.0
    %v1064 = vadd.f32 %v1048, 1.0
    %v1065 = vadd.f32 %v1049, 1.0
    %v1066 = vadd.f32 %v1050, 1.0
    %v1067 = vadd.f32 %v1051, 1.0
    %v1068 = vadd.f32 %v1052, 1.0
    %v1069 = vadd.f32 %v1053, 1.0
    %v1070 = vadd.f32 %v1054, 1.0
    %v1071 = vmul.f32 %v943, %v1055
    %v1072 = vmul.f32 %v944, %v1056
    %v1073 = vmul.f32 %v945, %v1057
    %v1074 = vmul.f32 %v946, %v1058
    %v1075 = vmul.f32 %v947, %v1059
    %v1076 = vmul.f32 %v948, %v1060
    %v1077 = vmul.f32 %v949, %v1061
    %v1078 = vmul.f32 %v950, %v1062
    %v1079 = vmul.f32 %v951, %v1063
    %v1080 = vmul.f32 %v952, %v1064
    %v1081 = vmul.f32 %v953, %v1065
    %v1082 = vmul.f32 %v954, %v1066
    %v1083 = vmul.f32 %v955, %v1067
    %v1084 = vmul.f32 %v956, %v1068
    %v1085 = vmul.f32 %v957, %v1069
    %v1086 = vmul.f32 %v958, %v1070
    %v1087 = vld [vmem:[%s5] sm:$0xff]
    %v1088 = vld [vmem:[%s5 + $0x8] sm:$0xff]
    %v1089 = vld [vmem:[%s5 + $0x10] sm:$0xff]
    %v1090 = vld [vmem:[%s5 + $0x18] sm:$0xff]
    %v1091 = vld [vmem:[%s6] sm:$0x1]
    %v1093 = vlaneseq
    %v1094 = vshrl.u32 %v1093, 7
    %v1095 = vsub.s32 0, %v1094
    %v1096 = vrot.slane %v1091, %v1095
    %v1099 = vsel %vm390, %v1071, 0
    %v1102 = vsel %vm390, %v1072, 0
    %v1105 = vsel %vm390, %v1073, 0
    %v1108 = vsel %vm390, %v1074, 0
    %v1111 = vsel %vm390, %v1075, 0
    %v1114 = vsel %vm390, %v1076, 0
    %v1117 = vsel %vm390, %v1077, 0
    %v1120 = vsel %vm390, %v1078, 0
    %v1123 = vsel %vm390, %v1079, 0
    %v1126 = vsel %vm390, %v1080, 0
    %v1129 = vsel %vm390, %v1081, 0
    %v1132 = vsel %vm390, %v1082, 0
    %v1135 = vsel %vm390, %v1083, 0
    %v1138 = vsel %vm390, %v1084, 0
    %v1141 = vsel %vm390, %v1085, 0
    %v1144 = vsel %vm390, %v1086, 0
    %1146 = vmatprep.subr.mxu0 0.0
    %1147 = vmatpush1.msra.mxu0 %v1087
    %1148 = vmatprep.subr.mxu0 0.0
    %1149 = vmatpush1.msra.mxu0 %v1088
    %1150 = vmatprep.subr.mxu0 0.0
    %1151 = vmatpush1.msra.mxu0 %v1089
    %1152 = vmatprep.subr.mxu0 0.0
    %1153 = vmatpush1.msra.mxu0 %v1090
    %1154 = vmatprep.subr.mxu0 0.0
    %1155 = vmatpush1.msra.mxu0 0.0
    %1156 = vmatprep.subr.mxu0 0.0
    %1157 = vmatpush1.msra.mxu0 0.0
    %1158 = vmatprep.subr.mxu0 0.0
    %1159 = vmatpush1.msra.mxu0 0.0
    %1160 = vmatprep.subr.mxu0 0.0
    %1161 = vmatpush1.msra.mxu0 0.0
    %1162 = vmatprep.subr.mxu0 0.0
    %1163 = vmatpush1.msra.mxu0 0.0
    %1164 = vmatprep.subr.mxu0 0.0
    %1165 = vmatpush1.msra.mxu0 0.0
    %1166 = vmatprep.subr.mxu0 0.0
    %1167 = vmatpush1.msra.mxu0 0.0
    %1168 = vmatprep.subr.mxu0 0.0
    %1169 = vmatpush1.msra.mxu0 0.0
    %1170 = vmatprep.subr.mxu0 0.0
    %1171 = vmatpush1.msra.mxu0 0.0
    %1172 = vmatprep.subr.mxu0 0.0
    %1173 = vmatpush1.msra.mxu0 0.0
    %1174 = vmatprep.subr.mxu0 0.0
    %1175 = vmatpush1.msra.mxu0 0.0
    %1176 = vmatprep.subr.mxu0 0.0
    %1177 = vmatpush1.msra.mxu0 0.0
    %1178 = vmatprep.subr.mxu0 0.0
    %1179 = vmatpush1.msra.mxu0 0.0
    %1180 = vmatprep.subr.mxu0 0.0
    %1181 = vmatpush1.msra.mxu0 0.0
    %1182 = vmatprep.subr.mxu0 0.0
    %1183 = vmatpush1.msra.mxu0 0.0
    %1184 = vmatprep.subr.mxu0 0.0
    %1185 = vmatpush1.msra.mxu0 0.0
    %1186 = vmatprep.subr.mxu0 0.0
    %1187 = vmatpush1.msra.mxu0 0.0
    %1188 = vmatprep.subr.mxu0 0.0
    %1189 = vmatpush1.msra.mxu0 0.0
    %1190 = vmatprep.subr.mxu0 0.0
    %1191 = vmatpush1.msra.mxu0 0.0
    %1192 = vmatprep.subr.mxu0 0.0
    %1193 = vmatpush1.msra.mxu0 0.0
    %1194 = vmatprep.subr.mxu0 0.0
    %1195 = vmatpush1.msra.mxu0 0.0
    %1196 = vmatprep.subr.mxu0 0.0
    %1197 = vmatpush1.msra.mxu0 0.0
    %1198 = vmatprep.subr.mxu0 0.0
    %1199 = vmatpush1.msra.mxu0 0.0
    %1200 = vmatprep.subr.mxu0 0.0
    %1201 = vmatpush1.msra.mxu0 0.0
    %1202 = vmatprep.subr.mxu0 0.0
    %1203 = vmatpush1.msra.mxu0 0.0
    %1204 = vmatprep.subr.mxu0 0.0
    %1205 = vmatpush1.msra.mxu0 0.0
    %1206 = vmatprep.subr.mxu0 0.0
    %1207 = vmatpush1.msra.mxu0 0.0
    %1208 = vmatprep.subr.mxu0 0.0
    %1209 = vmatpush1.msra.mxu0 0.0
    %1210 = vmatprep.mubr.f32.mxu0 0.0
    %1211 = vmatmul.mubr.f32.gmra.mrb[0].mxu0 %v1099
    %v1212 = vpop.f32.mrb[0].mxu0
    %v1213 = vadd.f32 %v1096, %v1212
    %v1214 = vpop.f32.mrb[0].mxu0
    %1215 = vmatprep.mubr.f32.mxu0 0.0
    %1216 = vmatmul.mubr.f32.gmra.mrb[0].mxu0 %v1102
    %v1217 = vpop.f32.mrb[0].mxu0
    %v1218 = vadd.f32 %v1096, %v1217
    %v1219 = vpop.f32.mrb[0].mxu0
    %1220 = vmatprep.mubr.f32.mxu0 0.0
    %1221 = vmatmul.mubr.f32.gmra.mrb[0].mxu0 %v1105
    %v1222 = vpop.f32.mrb[0].mxu0
    %v1223 = vadd.f32 %v1096, %v1222
    %v1224 = vpop.f32.mrb[0].mxu0
    %1225 = vmatprep.mubr.f32.mxu0 0.0
    %1226 = vmatmul.mubr.f32.gmra.mrb[0].mxu0 %v1108
    %v1227 = vpop.f32.mrb[0].mxu0
    %v1228 = vadd.f32 %v1096, %v1227
    %v1229 = vpop.f32.mrb[0].mxu0
    %1230 = vmatprep.mubr.f32.mxu0 0.0
    %1231 = vmatmul.mubr.f32.gmra.mrb[0].mxu0 %v1111
    %v1232 = vpop.f32.mrb[0].mxu0
    %v1233 = vadd.f32 %v1096, %v1232
    %v1234 = vpop.f32.mrb[0].mxu0
    %1235 = vmatprep.mubr.f32.mxu0 0.0
    %1236 = vmatmul.mubr.f32.gmra.mrb[0].mxu0 %v1114
    %v1237 = vpop.f32.mrb[0].mxu0
    %v1238 = vadd.f32 %v1096, %v1237
    %v1239 = vpop.f32.mrb[0].mxu0
    %1240 = vmatprep.mubr.f32.mxu0 0.0
    %1241 = vmatmul.mubr.f32.gmra.mrb[0].mxu0 %v1117
    %v1242 = vpop.f32.mrb[0].mxu0
    %v1243 = vadd.f32 %v1096, %v1242
    %v1244 = vpop.f32.mrb[0].mxu0
    %1245 = vmatprep.mubr.f32.mxu0 0.0
    %1246 = vmatmul.mubr.f32.gmra.mrb[0].mxu0 %v1120
    %v1247 = vpop.f32.mrb[0].mxu0
    %v1248 = vadd.f32 %v1096, %v1247
    %v1249 = vpop.f32.mrb[0].mxu0
    %1250 = vmatprep.mubr.f32.mxu0 0.0
    %1251 = vmatmul.mubr.f32.gmra.mrb[0].mxu0 %v1123
    %v1252 = vpop.f32.mrb[0].mxu0
    %v1253 = vadd.f32 %v1096, %v1252
    %v1254 = vpop.f32.mrb[0].mxu0
    %1255 = vmatprep.mubr.f32.mxu0 0.0
    %1256 = vmatmul.mubr.f32.gmra.mrb[0].mxu0 %v1126
    %v1257 = vpop.f32.mrb[0].mxu0
    %v1258 = vadd.f32 %v1096, %v1257
    %v1259 = vpop.f32.mrb[0].mxu0
    %1260 = vmatprep.mubr.f32.mxu0 0.0
    %1261 = vmatmul.mubr.f32.gmra.mrb[0].mxu0 %v1129
    %v1262 = vpop.f32.mrb[0].mxu0
    %v1263 = vadd.f32 %v1096, %v1262
    %v1264 = vpop.f32.mrb[0].mxu0
    %1265 = vmatprep.mubr.f32.mxu0 0.0
    %1266 = vmatmul.mubr.f32.gmra.mrb[0].mxu0 %v1132
    %v1267 = vpop.f32.mrb[0].mxu0
    %v1268 = vadd.f32 %v1096, %v1267
    %v1269 = vpop.f32.mrb[0].mxu0
    %1270 = vmatprep.mubr.f32.mxu0 0.0
    %1271 = vmatmul.mubr.f32.gmra.mrb[0].mxu0 %v1135
    %v1272 = vpop.f32.mrb[0].mxu0
    %v1273 = vadd.f32 %v1096, %v1272
    %v1274 = vpop.f32.mrb[0].mxu0
    %1275 = vmatprep.mubr.f32.mxu0 0.0
    %1276 = vmatmul.mubr.f32.gmra.mrb[0].mxu0 %v1138
    %v1277 = vpop.f32.mrb[0].mxu0
    %v1278 = vadd.f32 %v1096, %v1277
    %v1279 = vpop.f32.mrb[0].mxu0
    %1280 = vmatprep.mubr.f32.mxu0 0.0
    %1281 = vmatmul.mubr.f32.gmra.mrb[0].mxu0 %v1141
    %v1282 = vpop.f32.mrb[0].mxu0
    %v1283 = vadd.f32 %v1096, %v1282
    %v1284 = vpop.f32.mrb[0].mxu0
    %1285 = vmatprep.mubr.f32.mxu0 0.0
    %1286 = vmatmul.mubr.f32.gmra.mrb[0].mxu0 %v1144
    %v1287 = vpop.f32.mrb[0].mxu0
    %v1288 = vadd.f32 %v1096, %v1287
    %v1289 = vpop.f32.mrb[0].mxu0
    %1290 = vdwg.mxu0
    %1291 = vst.msk [vmem:[%s432 + $0x1] sm:$0xff] %vm390, %v1213
    %1292 = vst.msk [vmem:[%s432 + $0x11] sm:$0xff] %vm390, %v1218
    %1293 = vst.msk [vmem:[%s432 + $0x21] sm:$0xff] %vm390, %v1223
    %1294 = vst.msk [vmem:[%s432 + $0x31] sm:$0xff] %vm390, %v1228
    %1295 = vst.msk [vmem:[%s432 + $0x41] sm:$0xff] %vm390, %v1233
    %1296 = vst.msk [vmem:[%s432 + $0x51] sm:$0xff] %vm390, %v1238
    %1297 = vst.msk [vmem:[%s432 + $0x61] sm:$0xff] %vm390, %v1243
    %1298 = vst.msk [vmem:[%s432 + $0x71] sm:$0xff] %vm390, %v1248
    %1299 = vst.msk [vmem:[%s432 + $0xa1] sm:$0xff] %vm390, %v1253
    %1300 = vst.msk [vmem:[%s432 + $0xb1] sm:$0xff] %vm390, %v1258
    %1301 = vst.msk [vmem:[%s432 + $0xc1] sm:$0xff] %vm390, %v1263
    %1302 = vst.msk [vmem:[%s432 + $0xd1] sm:$0xff] %vm390, %v1268
    %1303 = vst.msk [vmem:[%s432 + $0xe1] sm:$0xff] %vm390, %v1273
    %1304 = vst.msk [vmem:[%s432 + $0xf1] sm:$0xff] %vm390, %v1278
    %1305 = vst.msk [vmem:[%s432 + $0x101] sm:$0xff] %vm390, %v1283
    %1306 = vst.msk [vmem:[%s432 + $0x111] sm:$0xff] %vm390, %v1288
    %s1307 = scalar_lea.vmem %s432, 1 [#allocation2]
    %v1308 = vld [vmem:[%s1307] ss:$2 sm:$0xf]
    %s1309 = scalar_lea.vmem %s432, 33 [#allocation2]
    %v1310 = vld [vmem:[%s1309] ss:$2 sm:$0xf]
    %s1311 = scalar_lea.vmem %s432, 65 [#allocation2]
    %v1312 = vld [vmem:[%s1311] ss:$2 sm:$0xf]
    %s1313 = scalar_lea.vmem %s432, 97 [#allocation2]
    %v1314 = vld [vmem:[%s1313] ss:$2 sm:$0xf]
    %s1315 = scalar_lea.vmem %s432, 161 [#allocation2]
    %v1316 = vld [vmem:[%s1315] ss:$2 sm:$0xf]
    %s1317 = scalar_lea.vmem %s432, 193 [#allocation2]
    %v1318 = vld [vmem:[%s1317] ss:$2 sm:$0xf]
    %s1319 = scalar_lea.vmem %s432, 225 [#allocation2]
    %v1320 = vld [vmem:[%s1319] ss:$2 sm:$0xf]
    %s1321 = scalar_lea.vmem %s432, 257 [#allocation2]
    %v1322 = vld [vmem:[%s1321] ss:$2 sm:$0xf]
    %vm1323 = vcmask 257024
    %1324 = vst.msk [vmem:[#allocation3] sm:$0xf] %vm1323, %v1308
    %1325 = vst.msk [vmem:[#allocation3 + $0x4] sm:$0xf] %vm1323, %v1310
    %1326 = vst.msk [vmem:[#allocation3 + $0x8] sm:$0xf] %vm1323, %v1312
    %1327 = vst.msk [vmem:[#allocation3 + $0xc] sm:$0xf] %vm1323, %v1314
    %1328 = vst.msk [vmem:[#allocation3 + $0x10] sm:$0xf] %vm1323, %v1316
    %1329 = vst.msk [vmem:[#allocation3 + $0x14] sm:$0xf] %vm1323, %v1318
    %1330 = vst.msk [vmem:[#allocation3 + $0x18] sm:$0xf] %vm1323, %v1320
    %1331 = vst.msk [vmem:[#allocation3 + $0x1c] sm:$0xf] %vm1323, %v1322
    // Predicated region
    $region30: #{patch_merging.1} parent=1 // pred_check
      _
    $region31: #{patch_merging.1} parent=1 // pred_check_branch
      %1333 = sbr.rel (0) target = $region33
    $region32: #{patch_merging.1} parent=1 // pred_region
      %s1335 = ssub.s32 512, 512
      %1336 = vsyncadd [#allocation4], %s1335
      %s1337 = sshll.u32 [#allocation3], 4
      %s1338 = int_to_ptr.vmem [resolvable:$true] %s1337
      %1343 = dma.vmem_to_hbm [thread:$0]  %s1338, 512, %s7, [#allocation4], 64, 64, 4
    $region33: #{patch_merging.1} parent=1 // pred_fallthru
      _
    // Predicated region
    $region34: #{patch_merging.1} parent=1 // pred_check
      _
    $region35: #{patch_merging.1} parent=1 // pred_check_branch
      %1345 = sbr.rel (0) target = $region37
    $region36: #{patch_merging.1} parent=1 // pred_region
      %1346 = dma.done [#allocation4], 512
    $region37: #{patch_merging.1} parent=1 // pred_fallthru
      _
    %1347 = vsyncpa [#allocation4], 1

</llo_original>
